<compile_context>
chip_gen: v7x
topology: tpu7x:2x2x1
jax: 0.10.0
libtpu: 0.0.40
codegen_flags: <defaults>
</compile_context>

<pallas_src>
import functools

import jax
import jax.numpy as jnp
from jax import lax
from jax.experimental import pallas as pl
from jax.experimental.pallas import tpu as pltpu

_LANE = 128
_SUBLANE = 8


def _gat_kernel(alpha, residual, n_edges,
                src_col_ref, dst_col_ref, dst_row_ref,   # i32 [Ep,1],[Ep,1],[1,Ep]
                node_ref, edge_ref,                      # f32 [Np,Dp], [Ep,Dp]
                w_edge_ref,                              # bf16 [Dp,2Dp] = [W_fa_e | W_feup_e]
                w_fa_n_ref,                              # bf16 [Dp,Dp]
                w_nup_ref,                               # bf16 [2Dp,Dp] = [W_fnup_z ; W_fnup_x]
                w_fe_c_ref,                              # bf16 [Dp,Dp]
                node_out_ref, edge_out_ref):             # f32 [Np,Dp], [Ep,Dp]
    f32 = jnp.float32
    bf16 = jnp.bfloat16
    n_pad = node_ref.shape[0]                            # Np
    e_pad = edge_ref.shape[0]                            # Ep
    dp = edge_ref.shape[1]                               # Dp

    x_n = node_ref[...]
    x_e = edge_ref[...]
    x_n_b = x_n.astype(bf16)
    x_e_b = x_e.astype(bf16)

    # -- 1. on-the-fly one-hot incidence masks (live only in VMEM, per call)
    iota_node = lax.broadcasted_iota(jnp.int32, (e_pad, n_pad), 1)
    m_dst_f = (dst_col_ref[...] == iota_node).astype(f32)          # [Ep, Np]
    m_src_f = (src_col_ref[...] == iota_node).astype(f32)          # [Ep, Np]

    # -- 2. endpoint gather as ONE stacked MXU matmul: rows [:Ep]=dst_x, [Ep:]=src_x
    m_stack_b = jnp.concatenate([m_dst_f, m_src_f], axis=0).astype(bf16)
    ends = jnp.dot(m_stack_b, x_n_b, preferred_element_type=f32)   # [2Ep, Dp]
    dst_x = ends[:e_pad]
    src_x = ends[e_pad:]

    # -- 3. fused edge-LHS matmul: fa edge-term and feup edge-term in one 2*Dp-wide dot
    et = jnp.dot(x_e_b, w_edge_ref[...], preferred_element_type=f32)   # [Ep, 2Dp]
    edge_fa = et[:, :dp]
    edge_fe = et[:, dp:]

    # stacked node-term dot against the node half of W_fa (a_p uses dst, a_r uses src)
    nd = jnp.dot(ends.astype(bf16), w_fa_n_ref[...], preferred_element_type=f32)
    logit_p = edge_fa + nd[:e_pad]
    logit_r = edge_fa + nd[e_pad:]

    valid = None
    if e_pad != n_edges:
        # padded edge rows must not affect the per-column max / segment sums
        valid = lax.broadcasted_iota(jnp.int32, (e_pad, 1), 0) < n_edges
        logit_p = jnp.where(valid, logit_p, -1e30)
        logit_r = jnp.where(valid, logit_r, -1e30)

    # NOTE: a_p and a_r deliberately use separate per-column maxes (matches the
    # reference; this is not a joint softmax).
    a_p = jnp.exp(logit_p - jnp.max(logit_p, axis=0, keepdims=True))
    a_r = jnp.exp(logit_r - jnp.max(logit_r, axis=0, keepdims=True))

    def lrelu(v):
        return jnp.where(v >= 0, v, alpha * v)

    # -- 4. edge update, hoisted BEFORE the z/z2 path so src_x/dst_x/a_r/x_e_b
    #       live ranges end here (only a_p, m_dst, x_e survive past this point).
    a_sum = a_p + a_r
    if valid is not None:
        a_sum = jnp.where(valid, a_sum, 1.0)
    inv_sum = 1.0 / a_sum                     # exact divide: tiny, keeps accuracy
    a_pn = a_p * inv_sum
    a_rn = a_r * inv_sum
    comb = a_rn * src_x + a_pn * dst_x
    e_up = (jnp.dot(comb.astype(bf16), w_fe_c_ref[...], preferred_element_type=f32)
            + edge_fe)
    if residual:
        edge_out_ref[...] = lrelu(e_up) + x_e
    else:
        edge_out_ref[...] = lrelu(e_up)

    # -- 5. segment sums as mask matmuls (f32 operands keep the sums accurate)
    iota_node_t = lax.broadcasted_iota(jnp.int32, (n_pad, e_pad), 0)
    m_dst_t_f = (dst_row_ref[...] == iota_node_t).astype(f32)      # [Np, Ep]
    z = jnp.dot(m_dst_t_f, a_p, preferred_element_type=f32)        # [Np, Dp]
    # approx reciprocal on the EUP; zero-in-degree / padded node rows come out
    # as ~1e5 with coarse relative error, but no edge ever gathers those rows.
    z_inv = pl.reciprocal(z + 1e-5, approx=True)
    z_dst = jnp.dot(m_dst_f, z_inv, preferred_element_type=f32)    # [Ep, Dp] = 1/(z[dst]+eps)
    a_x = a_p * z_dst * x_e
    z2 = jnp.dot(m_dst_t_f, a_x, preferred_element_type=f32)       # [Np, Dp]

    # -- 6. node update: fnup(cat(z2, x_n)) as a single K = 2*Dp matmul
    ft_in = jnp.concatenate([z2.astype(bf16), x_n_b], axis=1)      # [Np, 2Dp]
    ft = jnp.dot(ft_in, w_nup_ref[...], preferred_element_type=f32)
    if residual:
        node_out_ref[...] = lrelu(ft) + x_n
    else:
        node_out_ref[...] = lrelu(ft)


def _round_up(x, m):
    return (x + m - 1) // m * m


def _pad_cast(w, rows, cols):
    """Zero-pad an f32 weight block to [rows, cols] and cast to bf16."""
    out = jnp.zeros((rows, cols), jnp.float32).at[:w.shape[0], :w.shape[1]].set(w)
    return out.astype(jnp.bfloat16)


def _vmem_limit_bytes(estimate):
    """Footprint-scaled VMEM limit, clamped to ~75% of physical capacity."""
    try:
        phys = int(pltpu.get_tpu_info().vmem_capacity_bytes)
    except Exception:
        phys = 64 * 1024 * 1024       # conservative default (v7x per-core VMEM)
    lo = 16 * 1024 * 1024
    hi = int(0.75 * phys)             # headroom for Mosaic's own scratch
    return int(min(max(2 * estimate, lo), max(lo, hi)))


@functools.partial(jax.jit, static_argnames=("alpha", "residual"))
def graph_attention(node_x, edge_x, src, dst, W_fa, W_fnup, W_feup,
                    alpha=0.2, residual=False):
    N, Dn = node_x.shape
    E, De = edge_x.shape
    assert Dn == De, "module semantics require node_dim == edge_dim"
    Dp = _round_up(Dn, _LANE)      # lane-dense feature width
    Np = _round_up(N, _LANE)       # lane-dense mask width; padded node rows are benign
    Ep = _round_up(E, _SUBLANE)    # sublane-aligned edge count; padded edges masked

    f32, i32 = jnp.float32, jnp.int32
    node_p = jnp.zeros((Np, Dp), f32).at[:N, :Dn].set(node_x)
    edge_p = jnp.zeros((Ep, Dp), f32).at[:E, :De].set(edge_x)
    src_i = jnp.zeros((Ep,), i32).at[:E].set(src.astype(i32))
    dst_i = jnp.zeros((Ep,), i32).at[:E].set(dst.astype(i32))

    # torch Linear weights are [out, in]; y = x @ W.T.  Split by cat order,
    # pad each block to lane-dense [Dp, Dp] bf16, and fuse same-LHS blocks.
    WfaT = W_fa.T                  # cat(edge_x, dst/src_x) -> edge_dim
    WfeT = W_feup.T                # cat(comb,   edge_x)    -> edge_dim
    WfnT = W_fnup.T                # cat(z2,     node_x)    -> node_dim
    w_edge = jnp.concatenate(      # [Dp, 2Dp]: cols [:Dp]=fa edge half, [Dp:]=feup edge half
        [_pad_cast(WfaT[:De], Dp, Dp), _pad_cast(WfeT[Dn:], Dp, Dp)], axis=1)
    w_fa_n = _pad_cast(WfaT[De:], Dp, Dp)
    w_nup = jnp.concatenate(       # [2Dp, Dp]: rows [:Dp]=z2 half, [Dp:]=node half
        [_pad_cast(WfnT[:De], Dp, Dp), _pad_cast(WfnT[De:], Dp, Dp)], axis=0)
    w_fe_c = _pad_cast(WfeT[:Dn], Dp, Dp)

    # rough single-pass VMEM footprint (in/out + masks + intermediates)
    est = 4 * (2 * Np * Dp + 2 * Ep * Dp)                 # node/edge in+out (f32)
    est += 2 * (2 * Dp * Dp + Dp * Dp + 2 * Dp * Dp + Dp * Dp)   # bf16 weights
    est += 4 * (3 * Ep * Np + Np * Ep)                    # incidence masks
    est += 4 * (8 * Ep * Dp + 4 * Np * Dp)                # a_p/a_r/comb/... + z/z2/ft

    vmem = pl.BlockSpec(memory_space=pltpu.MemorySpace.VMEM)
    kernel = functools.partial(_gat_kernel, float(alpha), bool(residual), int(E))

    node_out, edge_out = pl.pallas_call(
        kernel,
        out_shape=(jax.ShapeDtypeStruct((Np, Dp), f32),
                   jax.ShapeDtypeStruct((Ep, Dp), f32)),
        in_specs=[vmem] * 9,
        out_specs=(vmem, vmem),
        compiler_params=pltpu.CompilerParams(
            vmem_limit_bytes=_vmem_limit_bytes(est)),
    )(src_i.reshape(Ep, 1), dst_i.reshape(Ep, 1), dst_i.reshape(1, Ep),
      node_p, edge_p, w_edge, w_fa_n, w_nup, w_fe_c)

    return node_out[:N, :Dn], edge_out[:E, :De]


def reference(node_x, edge_x, src, dst, W_fa, W_fnup, W_feup, alpha, residual):
    """Pure-JAX f32 reference mirroring the DGL/PyTorch forward."""
    N = node_x.shape[0]
    src_x = node_x[src]
    dst_x = node_x[dst]
    a_p = jnp.concatenate([edge_x, dst_x], 1) @ W_fa.T
    a_p = jnp.exp(a_p - jnp.max(a_p, axis=0, keepdims=True))
    a_r = jnp.concatenate([edge_x, src_x], 1) @ W_fa.T
    a_r = jnp.exp(a_r - jnp.max(a_r, axis=0, keepdims=True))
    z = jax.ops.segment_sum(a_p, dst, N)
    a = a_p / (z[dst] + 1e-5)
    a_x = a * edge_x
    z2 = jax.ops.segment_sum(a_x, dst, N)
    ft = jnp.concatenate([z2, node_x], 1) @ W_fnup.T
    a_sum = a_p + a_r
    a_pn, a_rn = a_p / a_sum, a_r / a_sum
    e_up = jnp.concatenate([a_rn * src_x + a_pn * dst_x, edge_x], 1) @ W_feup.T
    lr = lambda v: jnp.where(v >= 0, v, alpha * v)
    if residual:
        return lr(ft) + node_x, lr(e_up) + edge_x
    return lr(ft), lr(e_up)


def xavier_normal(key, out_dim, in_dim, gain=1.414):
    std = gain * (2.0 / (in_dim + out_dim)) ** 0.5
    return std * jax.random.normal(key, (out_dim, in_dim), dtype=jnp.float32)


if __name__ == "__main__":
    node_dim = 32
    edge_dim = 32
    N, E = 8, 16
    alpha = 0.2

    key = jax.random.PRNGKey(0)
    k1, k2, k3, k4, k5, k6, k7 = jax.random.split(key, 7)

    node_x = jax.random.normal(k1, (N, node_dim), dtype=jnp.float32)
    edge_x = jax.random.normal(k2, (E, edge_dim), dtype=jnp.float32)
    src = jax.random.randint(k3, (E,), 0, N)
    dst = jax.random.randint(k4, (E,), 0, N)

    W_fa = xavier_normal(k5, edge_dim, node_dim + edge_dim)
    W_fnup = xavier_normal(k6, node_dim, node_dim + edge_dim)
    W_feup = xavier_normal(k7, edge_dim, node_dim + edge_dim)

    for residual in (False, True):
        n_out, e_out = graph_attention(node_x, edge_x, src, dst,
                                       W_fa, W_fnup, W_feup,
                                       alpha=alpha, residual=residual)
        jax.block_until_ready((n_out, e_out))

        n_ref, e_ref = reference(node_x, edge_x, src, dst,
                                 W_fa, W_fnup, W_feup, alpha, residual)
        # bf16 MXU operands on the weight/gather path + one approx reciprocal
        assert jnp.allclose(n_out, n_ref, rtol=5e-2, atol=5e-2), \
            f"node output mismatch (residual={residual})"
        assert jnp.allclose(e_out, e_ref, rtol=5e-2, atol=5e-2), \
            f"edge output mismatch (residual={residual})"

    print("KERNEL_OK")
</pallas_src>

<mosaic_0001>
module attributes {stable_mosaic.version = 11 : i64} {
  func.func @_gat_kernel(%arg0: memref<16x1xi32, #tpu.memory_space<vmem>>, %arg1: memref<16x1xi32, #tpu.memory_space<vmem>>, %arg2: memref<1x16xi32, #tpu.memory_space<vmem>>, %arg3: memref<128x128xf32, #tpu.memory_space<vmem>>, %arg4: memref<16x128xf32, #tpu.memory_space<vmem>>, %arg5: memref<128x256xbf16, #tpu.memory_space<vmem>>, %arg6: memref<128x128xbf16, #tpu.memory_space<vmem>>, %arg7: memref<256x128xbf16, #tpu.memory_space<vmem>>, %arg8: memref<128x128xbf16, #tpu.memory_space<vmem>>, %arg9: memref<128x128xf32, #tpu.memory_space<vmem>>, %arg10: memref<16x128xf32, #tpu.memory_space<vmem>>) attributes {dimension_semantics = [], scalar_prefetch = 0 : i64, scratch_operands = 0 : i64, tpu.core_type = #tpu.core_type<tc>} {
    %c0 = arith.constant 0 : index
    %c0_0 = arith.constant 0 : index
    %0 = vector.load %arg3[%c0, %c0_0] : memref<128x128xf32, #tpu.memory_space<vmem>>, vector<128x128xf32>
    %c0_1 = arith.constant 0 : index
    %c0_2 = arith.constant 0 : index
    %1 = vector.load %arg4[%c0_1, %c0_2] : memref<16x128xf32, #tpu.memory_space<vmem>>, vector<16x128xf32>
    %2 = arith.truncf %0 : vector<128x128xf32> to vector<128x128xbf16>
    %3 = arith.truncf %1 : vector<16x128xf32> to vector<16x128xbf16>
    %4 = tpu.iota {dimensions = array<i32: 1>} : vector<16x128xi32>
    %c0_3 = arith.constant 0 : index
    %c0_4 = arith.constant 0 : index
    %5 = vector.load %arg1[%c0_3, %c0_4] : memref<16x1xi32, #tpu.memory_space<vmem>>, vector<16x1xi32>
    %6 = vector.broadcast %5 : vector<16x1xi32> to vector<16x128xi32>
    %7 = arith.cmpi eq, %6, %4 : vector<16x128xi32>
    %8 = arith.extui %7 : vector<16x128xi1> to vector<16x128xi32>
    %9 = arith.sitofp %8 : vector<16x128xi32> to vector<16x128xf32>
    %c0_5 = arith.constant 0 : index
    %c0_6 = arith.constant 0 : index
    %10 = vector.load %arg0[%c0_5, %c0_6] : memref<16x1xi32, #tpu.memory_space<vmem>>, vector<16x1xi32>
    %11 = vector.broadcast %10 : vector<16x1xi32> to vector<16x128xi32>
    %12 = arith.cmpi eq, %11, %4 : vector<16x128xi32>
    %13 = arith.extui %12 : vector<16x128xi1> to vector<16x128xi32>
    %14 = arith.sitofp %13 : vector<16x128xi32> to vector<16x128xf32>
    %15 = tpu.concatenate %9, %14 in 0 : vector<16x128xf32>, vector<16x128xf32> -> vector<32x128xf32>
    %16 = arith.truncf %15 : vector<32x128xf32> to vector<32x128xbf16>
    %cst = arith.constant dense<0.000000e+00> : vector<32x128xf32>
    %17 = tpu.matmul %16, %2, %cst {dimension_numbers = #tpu.dot_dimension_numbers<[1], [0], [0], [1], [0, 0, 1, 1], [], []>} : vector<32x128xbf16>, vector<128x128xbf16>, vector<32x128xf32> -> vector<32x128xf32>
    %18 = vector.extract_strided_slice %17 {offsets = [0, 0], sizes = [16, 128], strides = [1, 1]} : vector<32x128xf32> to vector<16x128xf32>
    %19 = vector.extract_strided_slice %17 {offsets = [16, 0], sizes = [16, 128], strides = [1, 1]} : vector<32x128xf32> to vector<16x128xf32>
    %c0_7 = arith.constant 0 : index
    %c0_8 = arith.constant 0 : index
    %20 = vector.load %arg5[%c0_7, %c0_8] : memref<128x256xbf16, #tpu.memory_space<vmem>>, vector<128x256xbf16>
    %cst_9 = arith.constant dense<0.000000e+00> : vector<16x256xf32>
    %21 = tpu.matmul %3, %20, %cst_9 {dimension_numbers = #tpu.dot_dimension_numbers<[1], [0], [0], [1], [0, 0, 1, 1], [], []>} : vector<16x128xbf16>, vector<128x256xbf16>, vector<16x256xf32> -> vector<16x256xf32>
    %22 = vector.extract_strided_slice %21 {offsets = [0, 0], sizes = [16, 128], strides = [1, 1]} : vector<16x256xf32> to vector<16x128xf32>
    %23 = vector.extract_strided_slice %21 {offsets = [0, 128], sizes = [16, 128], strides = [1, 1]} : vector<16x256xf32> to vector<16x128xf32>
    %24 = arith.truncf %17 : vector<32x128xf32> to vector<32x128xbf16>
    %c0_10 = arith.constant 0 : index
    %c0_11 = arith.constant 0 : index
    %25 = vector.load %arg6[%c0_10, %c0_11] : memref<128x128xbf16, #tpu.memory_space<vmem>>, vector<128x128xbf16>
    %cst_12 = arith.constant dense<0.000000e+00> : vector<32x128xf32>
    %26 = tpu.matmul %24, %25, %cst_12 {dimension_numbers = #tpu.dot_dimension_numbers<[1], [0], [0], [1], [0, 0, 1, 1], [], []>} : vector<32x128xbf16>, vector<128x128xbf16>, vector<32x128xf32> -> vector<32x128xf32>
    %27 = vector.extract_strided_slice %26 {offsets = [0, 0], sizes = [16, 128], strides = [1, 1]} : vector<32x128xf32> to vector<16x128xf32>
    %28 = arith.addf %22, %27 : vector<16x128xf32>
    %29 = vector.extract_strided_slice %26 {offsets = [16, 0], sizes = [16, 128], strides = [1, 1]} : vector<32x128xf32> to vector<16x128xf32>
    %30 = arith.addf %22, %29 : vector<16x128xf32>
    %cst_13 = arith.constant dense<0xFF800000> : vector<128xf32>
    %31 = vector.multi_reduction <maximumf>, %28, %cst_13 [0] : vector<16x128xf32> to vector<128xf32>
    %32 = vector.shape_cast %31 : vector<128xf32> to vector<1x128xf32>
    %33 = vector.broadcast %32 : vector<1x128xf32> to vector<16x128xf32>
    %34 = arith.subf %28, %33 : vector<16x128xf32>
    %35 = math.exp %34 : vector<16x128xf32>
    %cst_14 = arith.constant dense<0xFF800000> : vector<128xf32>
    %36 = vector.multi_reduction <maximumf>, %30, %cst_14 [0] : vector<16x128xf32> to vector<128xf32>
    %37 = vector.shape_cast %36 : vector<128xf32> to vector<1x128xf32>
    %38 = vector.broadcast %37 : vector<1x128xf32> to vector<16x128xf32>
    %39 = arith.subf %30, %38 : vector<16x128xf32>
    %40 = math.exp %39 : vector<16x128xf32>
    %41 = arith.addf %35, %40 : vector<16x128xf32>
    %cst_15 = arith.constant 1.000000e+00 : f32
    %42 = vector.broadcast %cst_15 : f32 to vector<16x128xf32>
    %43 = arith.divf %42, %41 : vector<16x128xf32>
    %44 = arith.mulf %35, %43 : vector<16x128xf32>
    %45 = arith.mulf %40, %43 : vector<16x128xf32>
    %46 = arith.mulf %45, %19 : vector<16x128xf32>
    %47 = arith.mulf %44, %18 : vector<16x128xf32>
    %48 = arith.addf %46, %47 : vector<16x128xf32>
    %49 = arith.truncf %48 : vector<16x128xf32> to vector<16x128xbf16>
    %c0_16 = arith.constant 0 : index
    %c0_17 = arith.constant 0 : index
    %50 = vector.load %arg8[%c0_16, %c0_17] : memref<128x128xbf16, #tpu.memory_space<vmem>>, vector<128x128xbf16>
    %cst_18 = arith.constant dense<0.000000e+00> : vector<16x128xf32>
    %51 = tpu.matmul %49, %50, %cst_18 {dimension_numbers = #tpu.dot_dimension_numbers<[1], [0], [0], [1], [0, 0, 1, 1], [], []>} : vector<16x128xbf16>, vector<128x128xbf16>, vector<16x128xf32> -> vector<16x128xf32>
    %52 = arith.addf %51, %23 : vector<16x128xf32>
    %cst_19 = arith.constant 0.000000e+00 : f32
    %53 = vector.broadcast %cst_19 : f32 to vector<16x128xf32>
    %54 = arith.cmpf oge, %52, %53 : vector<16x128xf32>
    %cst_20 = arith.constant 2.000000e-01 : f32
    %55 = vector.broadcast %cst_20 : f32 to vector<16x128xf32>
    %56 = arith.mulf %55, %52 : vector<16x128xf32>
    %57 = arith.select %54, %52, %56 : vector<16x128xi1>, vector<16x128xf32>
    %c0_21 = arith.constant 0 : index
    %c0_22 = arith.constant 0 : index
    %58 = vector.load %arg10[%c0_21, %c0_22] : memref<16x128xf32, #tpu.memory_space<vmem>>, vector<16x128xf32>
    tpu.vector_store %arg10[%c0_21, %c0_22], %57 {strides = array<i32>} : memref<16x128xf32, #tpu.memory_space<vmem>>, vector<16x128xf32>,
    %59 = tpu.iota {dimensions = array<i32: 0>} : vector<128x16xi32>
    %c0_23 = arith.constant 0 : index
    %c0_24 = arith.constant 0 : index
    %60 = vector.load %arg2[%c0_23, %c0_24] : memref<1x16xi32, #tpu.memory_space<vmem>>, vector<1x16xi32>
    %61 = vector.broadcast %60 : vector<1x16xi32> to vector<128x16xi32>
    %62 = arith.cmpi eq, %61, %59 : vector<128x16xi32>
    %63 = arith.extui %62 : vector<128x16xi1> to vector<128x16xi32>
    %64 = arith.sitofp %63 : vector<128x16xi32> to vector<128x16xf32>
    %cst_25 = arith.constant dense<0.000000e+00> : vector<128x128xf32>
    %65 = tpu.matmul %64, %35, %cst_25 {dimension_numbers = #tpu.dot_dimension_numbers<[1], [0], [0], [1], [0, 0, 1, 1], [], []>} : vector<128x16xf32>, vector<16x128xf32>, vector<128x128xf32> -> vector<128x128xf32>
    %cst_26 = arith.constant 9.99999974E-6 : f32
    %66 = vector.broadcast %cst_26 : f32 to vector<128x128xf32>
    %67 = arith.addf %65, %66 : vector<128x128xf32>
    %68 = tpu.reciprocal %67 {approx = true} : vector<128x128xf32> -> vector<128x128xf32>
    %cst_27 = arith.constant dense<0.000000e+00> : vector<16x128xf32>
    %69 = tpu.matmul %9, %68, %cst_27 {dimension_numbers = #tpu.dot_dimension_numbers<[1], [0], [0], [1], [0, 0, 1, 1], [], []>} : vector<16x128xf32>, vector<128x128xf32>, vector<16x128xf32> -> vector<16x128xf32>
    %70 = arith.mulf %35, %69 : vector<16x128xf32>
    %71 = arith.mulf %70, %1 : vector<16x128xf32>
    %cst_28 = arith.constant dense<0.000000e+00> : vector<128x128xf32>
    %72 = tpu.matmul %64, %71, %cst_28 {dimension_numbers = #tpu.dot_dimension_numbers<[1], [0], [0], [1], [0, 0, 1, 1], [], []>} : vector<128x16xf32>, vector<16x128xf32>, vector<128x128xf32> -> vector<128x128xf32>
    %73 = arith.truncf %72 : vector<128x128xf32> to vector<128x128xbf16>
    %74 = tpu.concatenate %73, %2 in 1 : vector<128x128xbf16>, vector<128x128xbf16> -> vector<128x256xbf16>
    %c0_29 = arith.constant 0 : index
    %c0_30 = arith.constant 0 : index
    %75 = vector.load %arg7[%c0_29, %c0_30] : memref<256x128xbf16, #tpu.memory_space<vmem>>, vector<256x128xbf16>
    %cst_31 = arith.constant dense<0.000000e+00> : vector<128x128xf32>
    %76 = tpu.matmul %74, %75, %cst_31 {dimension_numbers = #tpu.dot_dimension_numbers<[1], [0], [0], [1], [0, 0, 1, 1], [], []>} : vector<128x256xbf16>, vector<256x128xbf16>, vector<128x128xf32> -> vector<128x128xf32>
    %cst_32 = arith.constant 0.000000e+00 : f32
    %77 = vector.broadcast %cst_32 : f32 to vector<128x128xf32>
    %78 = arith.cmpf oge, %76, %77 : vector<128x128xf32>
    %cst_33 = arith.constant 2.000000e-01 : f32
    %79 = vector.broadcast %cst_33 : f32 to vector<128x128xf32>
    %80 = arith.mulf %79, %76 : vector<128x128xf32>
    %81 = arith.select %78, %76, %80 : vector<128x128xi1>, vector<128x128xf32>
    %c0_34 = arith.constant 0 : index
    %c0_35 = arith.constant 0 : index
    %82 = vector.load %arg9[%c0_34, %c0_35] : memref<128x128xf32, #tpu.memory_space<vmem>>, vector<128x128xf32>
    tpu.vector_store %arg9[%c0_34, %c0_35], %81 {strides = array<i32>} : memref<128x128xf32, #tpu.memory_space<vmem>>, vector<128x128xf32>,
    return
  }
}

</mosaic_0001>

<llo_original>
// kernel: graph_attention.1
$region0: #{graph_attention.1}
  #allocation0 [shape = 'u32[]', space=smem, size = 0x4, offset = 0x4, fixed_abs, tag = 'smem constant byte address 0x4 - core index']
  #allocation1 [shape = 'u32[144,128]{1,0:T(1,128)}', space=vmem, size = 0x12000, scoped, tag = 'internal scratch']
  %s0 = inlined_call_operand.vmem [shape: s32[16,1], index: 0, kind: input, shape index: {}]
  %s1 = inlined_call_operand.vmem [shape: s32[16,1], index: 1, kind: input, shape index: {}]
  %s2 = inlined_call_operand.vmem [shape: s32[1,16], index: 2, kind: input, shape index: {}]
  %s3 = inlined_call_operand.vmem [shape: f32[128,128], index: 3, kind: input, shape index: {}]
  %s4 = inlined_call_operand.vmem [shape: f32[16,128], index: 4, kind: input, shape index: {}]
  %s5 = inlined_call_operand.vmem [shape: bf16[128,256], index: 5, kind: input, shape index: {}]
  %s6 = inlined_call_operand.vmem [shape: bf16[128,128], index: 6, kind: input, shape index: {}]
  %s7 = inlined_call_operand.vmem [shape: bf16[256,128], index: 7, kind: input, shape index: {}]
  %s8 = inlined_call_operand.vmem [shape: bf16[128,128], index: 8, kind: input, shape index: {}]
  %s9 = inlined_call_operand.vmem [shape: f32[128,128], index: 9, kind: output, shape index: {0}]
  %s10 = inlined_call_operand.hbm [shape: f32[16,128], index: 10, kind: output, shape index: {1}]
  %11 = xla_tuple %s9, %s10
  %s12 = sld [smem:[#allocation0]]
  $region54: #{graph_attention.1} parent=0
    _
  %s14 = ssub.s32 1, %s12
  %s15 = scalar_select 0, %s14, %s12
  $region1: #{graph_attention.1} parent=0
    #allocation2 [shape = 'u8[8192]{0}', space=vmem, size = 0x2000, scoped, tag = 'output window, operand 1, single buffered']
    #allocation3 [shape = 's32[1]{0}', space=sflag, size = 0x4, scoped, tag = 'scoped memory for graph_attention.1']
    %16 = vsyncpa [#allocation3], 0
    // Predicated region
    $region2: #{graph_attention.1} parent=1 // pred_check
      _
    $region3: #{graph_attention.1} parent=1 // pred_check_branch
      %18 = sbr.rel (0) target = $region5
    $region4: #{graph_attention.1} parent=1 // pred_region
      _
    $region5: #{graph_attention.1} parent=1 // pred_fallthru
      _
    // Predicated region
    $region6: #{graph_attention.1} parent=1 // pred_check
      _
    $region7: #{graph_attention.1} parent=1 // pred_check_branch
      %20 = sbr.rel (0) target = $region9
    $region8: #{graph_attention.1} parent=1 // pred_region
      _
    $region9: #{graph_attention.1} parent=1 // pred_fallthru
      _
    // Predicated region
    $region10: #{graph_attention.1} parent=1 // pred_check
      _
    $region11: #{graph_attention.1} parent=1 // pred_check_branch
      %22 = sbr.rel (0) target = $region13
    $region12: #{graph_attention.1} parent=1 // pred_region
      _
    $region13: #{graph_attention.1} parent=1 // pred_fallthru
      _
    // Predicated region
    $region14: #{graph_attention.1} parent=1 // pred_check
      _
    $region15: #{graph_attention.1} parent=1 // pred_check_branch
      %24 = sbr.rel (0) target = $region17
    $region16: #{graph_attention.1} parent=1 // pred_region
      _
    $region17: #{graph_attention.1} parent=1 // pred_fallthru
      _
    // Predicated region
    $region18: #{graph_attention.1} parent=1 // pred_check
      _
    $region19: #{graph_attention.1} parent=1 // pred_check_branch
      %26 = sbr.rel (0) target = $region21
    $region20: #{graph_attention.1} parent=1 // pred_region
      _
    $region21: #{graph_attention.1} parent=1 // pred_fallthru
      _
    // Predicated region
    $region22: #{graph_attention.1} parent=1 // pred_check
      _
    $region23: #{graph_attention.1} parent=1 // pred_check_branch
      %28 = sbr.rel (0) target = $region25
    $region24: #{graph_attention.1} parent=1 // pred_region
      _
    $region25: #{graph_attention.1} parent=1 // pred_fallthru
      _
    // Predicated region
    $region26: #{graph_attention.1} parent=1 // pred_check
      _
    $region27: #{graph_attention.1} parent=1 // pred_check_branch
      %30 = sbr.rel (0) target = $region29
    $region28: #{graph_attention.1} parent=1 // pred_region
      _
    $region29: #{graph_attention.1} parent=1 // pred_fallthru
      _
    // Predicated region
    $region30: #{graph_attention.1} parent=1 // pred_check
      _
    $region31: #{graph_attention.1} parent=1 // pred_check_branch
      %32 = sbr.rel (0) target = $region33
    $region32: #{graph_attention.1} parent=1 // pred_region
      _
    $region33: #{graph_attention.1} parent=1 // pred_fallthru
      _
    // Predicated region
    $region34: #{graph_attention.1} parent=1 // pred_check
      _
    $region35: #{graph_attention.1} parent=1 // pred_check_branch
      %34 = sbr.rel (0) target = $region37
    $region36: #{graph_attention.1} parent=1 // pred_region
      _
    $region37: #{graph_attention.1} parent=1 // pred_fallthru
      _
    %v36 = vld [vmem:[%s3] sm:$0xff]
    %v37 = vld [vmem:[%s3 + $0x8] sm:$0xff]
    %v38 = vld [vmem:[%s3 + $0x10] sm:$0xff]
    %v39 = vld [vmem:[%s3 + $0x18] sm:$0xff]
    %v40 = vld [vmem:[%s3 + $0x20] sm:$0xff]
    %v41 = vld [vmem:[%s3 + $0x28] sm:$0xff]
    %v42 = vld [vmem:[%s3 + $0x30] sm:$0xff]
    %v43 = vld [vmem:[%s3 + $0x38] sm:$0xff]
    %v44 = vld [vmem:[%s3 + $0x40] sm:$0xff]
    %v45 = vld [vmem:[%s3 + $0x48] sm:$0xff]
    %v46 = vld [vmem:[%s3 + $0x50] sm:$0xff]
    %v47 = vld [vmem:[%s3 + $0x58] sm:$0xff]
    %v48 = vld [vmem:[%s3 + $0x60] sm:$0xff]
    %v49 = vld [vmem:[%s3 + $0x68] sm:$0xff]
    %v50 = vld [vmem:[%s3 + $0x70] sm:$0xff]
    %v51 = vld [vmem:[%s3 + $0x78] sm:$0xff]
    %v52 = vld [vmem:[%s4] sm:$0xff]
    %v53 = vld [vmem:[%s4 + $0x8] sm:$0xff]
    %v54 = vpack.c.bf16 %v37, %v36
    %v55 = vpack.c.bf16 %v39, %v38
    %v56 = vpack.c.bf16 %v41, %v40
    %v57 = vpack.c.bf16 %v43, %v42
    %v58 = vpack.c.bf16 %v45, %v44
    %v59 = vpack.c.bf16 %v47, %v46
    %v60 = vpack.c.bf16 %v49, %v48
    %v61 = vpack.c.bf16 %v51, %v50
    %v62 = vpack.c.bf16 %v53, %v52
    %v63 = vlaneseq
    %v64 = vand.u32 %v63, 127
    %v65 = vld [vmem:[%s1] sm:$0xff]
    %v66 = vld [vmem:[%s1 + $0x8] sm:$0xff]
    %67 = vset.pattern.permute.xlu0 0
    %68 = vperm.xlu0 %67, %v65
    %v69 = vpop.permute.xlu0 %68
    %70 = vset.pattern.permute.xlu0 0
    %71 = vperm.xlu0 %70, %v66
    %v72 = vpop.permute.xlu0 %71
    %vm73 = vcmp.eq.s32.totalorder %v69, %v64
    %vm74 = vcmp.eq.s32.totalorder %v72, %v64
    %v75 = vsel %vm73, 1, 0
    %v76 = vsel %vm74, 1, 0
    %v77 = vcvt.s32.f32 %v75
    %v78 = vcvt.s32.f32 %v76
    %v79 = vld [vmem:[%s0] sm:$0xff]
    %v80 = vld [vmem:[%s0 + $0x8] sm:$0xff]
    %81 = vset.pattern.permute.xlu0 0
    %82 = vperm.xlu0 %81, %v79
    %v83 = vpop.permute.xlu0 %82
    %84 = vset.pattern.permute.xlu0 0
    %85 = vperm.xlu0 %84, %v80
    %v86 = vpop.permute.xlu0 %85
    %vm87 = vcmp.eq.s32.totalorder %v83, %v64
    %vm88 = vcmp.eq.s32.totalorder %v86, %v64
    %v89 = vsel %vm87, 1, 0
    %v90 = vsel %vm88, 1, 0
    %v91 = vcvt.s32.f32 %v89
    %v92 = vcvt.s32.f32 %v90
    %v93 = vpack.c.bf16 %v78, %v77
    %v94 = vpack.c.bf16 %v92, %v91
    %95 = vmatprep.subr.bf16.mxu0 0
    %96 = vmatpush1.bf16.msra.mxu0 %v54
    %97 = vmatprep.subr.bf16.mxu0 0
    %98 = vmatpush1.bf16.msra.mxu0 %v55
    %99 = vmatprep.subr.bf16.mxu0 0
    %100 = vmatpush1.bf16.msra.mxu0 %v56
    %101 = vmatprep.subr.bf16.mxu0 0
    %102 = vmatpush1.bf16.msra.mxu0 %v57
    %103 = vmatprep.subr.bf16.mxu0 0
    %104 = vmatpush1.bf16.msra.mxu0 %v58
    %105 = vmatprep.subr.bf16.mxu0 0
    %106 = vmatpush1.bf16.msra.mxu0 %v59
    %107 = vmatprep.subr.bf16.mxu0 0
    %108 = vmatpush1.bf16.msra.mxu0 %v60
    %109 = vmatprep.subr.bf16.mxu0 0
    %110 = vmatpush1.bf16.msra.mxu0 %v61
    %111 = vmatprep.subr.bf16.mxu0 0
    %112 = vmatpush1.bf16.msra.mxu0 0
    %113 = vmatprep.subr.bf16.mxu0 0
    %114 = vmatpush1.bf16.msra.mxu0 0
    %115 = vmatprep.subr.bf16.mxu0 0
    %116 = vmatpush1.bf16.msra.mxu0 0
    %117 = vmatprep.subr.bf16.mxu0 0
    %118 = vmatpush1.bf16.msra.mxu0 0
    %119 = vmatprep.subr.bf16.mxu0 0
    %120 = vmatpush1.bf16.msra.mxu0 0
    %121 = vmatprep.subr.bf16.mxu0 0
    %122 = vmatpush1.bf16.msra.mxu0 0
    %123 = vmatprep.subr.bf16.mxu0 0
    %124 = vmatpush1.bf16.msra.mxu0 0
    %125 = vmatprep.subr.bf16.mxu0 0
    %126 = vmatpush1.bf16.msra.mxu0 0
    %127 = vmatprep.mubr.bf16.mxu0 0
    %128 = vmatmul.mubr.bf16.gmra.mrb[0].mxu0 %v93
    %v129 = vpop.f32.mrb[0].mxu0
    %v130 = vadd.f32 0.0, %v129
    %v131 = vpop.f32.mrb[0].mxu0
    %v132 = vpop.f32.mrb[0].mxu0
    %v133 = vadd.f32 0.0, %v132
    %v134 = vpop.f32.mrb[0].mxu0
    %135 = vmatprep.mubr.bf16.mxu0 0
    %136 = vmatmul.mubr.bf16.gmra.mrb[0].mxu0 %v94
    %v137 = vpop.f32.mrb[0].mxu0
    %v138 = vadd.f32 0.0, %v137
    %v139 = vpop.f32.mrb[0].mxu0
    %v140 = vpop.f32.mrb[0].mxu0
    %v141 = vadd.f32 0.0, %v140
    %v142 = vpop.f32.mrb[0].mxu0
    %143 = vdwg.mxu0
    %v144 = vld [vmem:[%s5] sm:$0xff]
    %v145 = vld [vmem:[%s5 + $0x8] sm:$0xff]
    %v146 = vld [vmem:[%s5 + $0x10] sm:$0xff]
    %v147 = vld [vmem:[%s5 + $0x18] sm:$0xff]
    %v148 = vld [vmem:[%s5 + $0x20] sm:$0xff]
    %v149 = vld [vmem:[%s5 + $0x28] sm:$0xff]
    %v150 = vld [vmem:[%s5 + $0x30] sm:$0xff]
    %v151 = vld [vmem:[%s5 + $0x38] sm:$0xff]
    %v152 = vld [vmem:[%s5 + $0x40] sm:$0xff]
    %v153 = vld [vmem:[%s5 + $0x48] sm:$0xff]
    %v154 = vld [vmem:[%s5 + $0x50] sm:$0xff]
    %v155 = vld [vmem:[%s5 + $0x58] sm:$0xff]
    %v156 = vld [vmem:[%s5 + $0x60] sm:$0xff]
    %v157 = vld [vmem:[%s5 + $0x68] sm:$0xff]
    %v158 = vld [vmem:[%s5 + $0x70] sm:$0xff]
    %v159 = vld [vmem:[%s5 + $0x78] sm:$0xff]
    %v176 = vunpack.c.l.b16 %v144
    %v177 = vunpack.c.h.b16 %v144
    %v178 = vunpack.c.l.b16 %v145
    %v179 = vunpack.c.h.b16 %v145
    %v180 = vunpack.c.l.b16 %v146
    %v181 = vunpack.c.h.b16 %v146
    %v182 = vunpack.c.l.b16 %v147
    %v183 = vunpack.c.h.b16 %v147
    %v184 = vunpack.c.l.b16 %v148
    %v185 = vunpack.c.h.b16 %v148
    %v186 = vunpack.c.l.b16 %v149
    %v187 = vunpack.c.h.b16 %v149
    %v188 = vunpack.c.l.b16 %v150
    %v189 = vunpack.c.h.b16 %v150
    %v190 = vunpack.c.l.b16 %v151
    %v191 = vunpack.c.h.b16 %v151
    %v192 = vunpack.c.l.b16 %v152
    %v193 = vunpack.c.h.b16 %v152
    %v194 = vunpack.c.l.b16 %v153
    %v195 = vunpack.c.h.b16 %v153
    %v196 = vunpack.c.l.b16 %v154
    %v197 = vunpack.c.h.b16 %v154
    %v198 = vunpack.c.l.b16 %v155
    %v199 = vunpack.c.h.b16 %v155
    %v200 = vunpack.c.l.b16 %v156
    %v201 = vunpack.c.h.b16 %v156
    %v202 = vunpack.c.l.b16 %v157
    %v203 = vunpack.c.h.b16 %v157
    %v204 = vunpack.c.l.b16 %v158
    %v205 = vunpack.c.h.b16 %v158
    %v206 = vunpack.c.l.b16 %v159
    %v207 = vunpack.c.h.b16 %v159
    %v208 = vpack.c.b16 %v178, %v176
    %v209 = vpack.c.b16 %v179, %v177
    %v210 = vpack.c.b16 %v182, %v180
    %v211 = vpack.c.b16 %v183, %v181
    %v212 = vpack.c.b16 %v186, %v184
    %v213 = vpack.c.b16 %v187, %v185
    %v214 = vpack.c.b16 %v190, %v188
    %v215 = vpack.c.b16 %v191, %v189
    %v216 = vpack.c.b16 %v194, %v192
    %v217 = vpack.c.b16 %v195, %v193
    %v218 = vpack.c.b16 %v198, %v196
    %v219 = vpack.c.b16 %v199, %v197
    %v220 = vpack.c.b16 %v202, %v200
    %v221 = vpack.c.b16 %v203, %v201
    %v222 = vpack.c.b16 %v206, %v204
    %v223 = vpack.c.b16 %v207, %v205
    %240 = vmatprep.subr.bf16.mxu0 %v209
    %241 = vmatpush1.bf16.msra.mxu0 %v208
    %242 = vmatprep.subr.bf16.mxu0 %v211
    %243 = vmatpush1.bf16.msra.mxu0 %v210
    %244 = vmatprep.subr.bf16.mxu0 %v213
    %245 = vmatpush1.bf16.msra.mxu0 %v212
    %246 = vmatprep.subr.bf16.mxu0 %v215
    %247 = vmatpush1.bf16.msra.mxu0 %v214
    %248 = vmatprep.subr.bf16.mxu0 %v217
    %249 = vmatpush1.bf16.msra.mxu0 %v216
    %250 = vmatprep.subr.bf16.mxu0 %v219
    %251 = vmatpush1.bf16.msra.mxu0 %v218
    %252 = vmatprep.subr.bf16.mxu0 %v221
    %253 = vmatpush1.bf16.msra.mxu0 %v220
    %254 = vmatprep.subr.bf16.mxu0 %v223
    %255 = vmatpush1.bf16.msra.mxu0 %v222
    %256 = vmatprep.subr.bf16.mxu0 0
    %257 = vmatpush1.bf16.msra.mxu0 0
    %258 = vmatprep.subr.bf16.mxu0 0
    %259 = vmatpush1.bf16.msra.mxu0 0
    %260 = vmatprep.subr.bf16.mxu0 0
    %261 = vmatpush1.bf16.msra.mxu0 0
    %262 = vmatprep.subr.bf16.mxu0 0
    %263 = vmatpush1.bf16.msra.mxu0 0
    %264 = vmatprep.subr.bf16.mxu0 0
    %265 = vmatpush1.bf16.msra.mxu0 0
    %266 = vmatprep.subr.bf16.mxu0 0
    %267 = vmatpush1.bf16.msra.mxu0 0
    %268 = vmatprep.subr.bf16.mxu0 0
    %269 = vmatpush1.bf16.msra.mxu0 0
    %270 = vmatprep.subr.bf16.mxu0 0
    %271 = vmatpush1.bf16.msra.mxu0 0
    %272 = vmatprep.mubr.bf16.mxu0 0
    %273 = vmatmul.mubr.bf16.gmra.mrb[0].mxu0 %v62
    %v274 = vpop.f32.mrb[0].mxu0
    %v275 = vadd.f32 0.0, %v274
    %v276 = vpop.f32.mrb[0].mxu0
    %v277 = vadd.f32 0.0, %v276
    %v278 = vpop.f32.mrb[0].mxu0
    %v279 = vadd.f32 0.0, %v278
    %v280 = vpop.f32.mrb[0].mxu0
    %v281 = vadd.f32 0.0, %v280
    %282 = vdwg.mxu0
    %v283 = vpack.c.bf16 %v133, %v130
    %v284 = vpack.c.bf16 %v141, %v138
    %v285 = vld [vmem:[%s6] sm:$0xf]
    %v286 = vld [vmem:[%s6 + $0x4] sm:$0xf]
    %v287 = vld [vmem:[%s6 + $0x8] sm:$0xf]
    %v288 = vld [vmem:[%s6 + $0xc] sm:$0xf]
    %v289 = vld [vmem:[%s6 + $0x10] sm:$0xf]
    %v290 = vld [vmem:[%s6 + $0x14] sm:$0xf]
    %v291 = vld [vmem:[%s6 + $0x18] sm:$0xf]
    %v292 = vld [vmem:[%s6 + $0x1c] sm:$0xf]
    %v293 = vld [vmem:[%s6 + $0x20] sm:$0xf]
    %v294 = vld [vmem:[%s6 + $0x24] sm:$0xf]
    %v295 = vld [vmem:[%s6 + $0x28] sm:$0xf]
    %v296 = vld [vmem:[%s6 + $0x2c] sm:$0xf]
    %v297 = vld [vmem:[%s6 + $0x30] sm:$0xf]
    %v298 = vld [vmem:[%s6 + $0x34] sm:$0xf]
    %v299 = vld [vmem:[%s6 + $0x38] sm:$0xf]
    %v300 = vld [vmem:[%s6 + $0x3c] sm:$0xf]
    %v317 = vunpack.c.l.b16 %v285
    %v318 = vunpack.c.l.b16 %v286
    %v319 = vunpack.c.l.b16 %v287
    %v320 = vunpack.c.l.b16 %v288
    %v321 = vunpack.c.l.b16 %v289
    %v322 = vunpack.c.l.b16 %v290
    %v323 = vunpack.c.l.b16 %v291
    %v324 = vunpack.c.l.b16 %v292
    %v325 = vunpack.c.l.b16 %v293
    %v326 = vunpack.c.l.b16 %v294
    %v327 = vunpack.c.l.b16 %v295
    %v328 = vunpack.c.l.b16 %v296
    %v329 = vunpack.c.l.b16 %v297
    %v330 = vunpack.c.l.b16 %v298
    %v331 = vunpack.c.l.b16 %v299
    %v332 = vunpack.c.l.b16 %v300
    %v333 = vpack.c.b16 %v318, %v317
    %v334 = vpack.c.b16 %v320, %v319
    %v335 = vpack.c.b16 %v322, %v321
    %v336 = vpack.c.b16 %v324, %v323
    %v337 = vpack.c.b16 %v326, %v325
    %v338 = vpack.c.b16 %v328, %v327
    %v339 = vpack.c.b16 %v330, %v329
    %v340 = vpack.c.b16 %v332, %v331
    %349 = vmatprep.subr.bf16.mxu0 0
    %350 = vmatpush1.bf16.msra.mxu0 %v333
    %351 = vmatprep.subr.bf16.mxu0 0
    %352 = vmatpush1.bf16.msra.mxu0 %v334
    %353 = vmatprep.subr.bf16.mxu0 0
    %354 = vmatpush1.bf16.msra.mxu0 %v335
    %355 = vmatprep.subr.bf16.mxu0 0
    %356 = vmatpush1.bf16.msra.mxu0 %v336
    %357 = vmatprep.subr.bf16.mxu0 0
    %358 = vmatpush1.bf16.msra.mxu0 %v337
    %359 = vmatprep.subr.bf16.mxu0 0
    %360 = vmatpush1.bf16.msra.mxu0 %v338
    %361 = vmatprep.subr.bf16.mxu0 0
    %362 = vmatpush1.bf16.msra.mxu0 %v339
    %363 = vmatprep.subr.bf16.mxu0 0
    %364 = vmatpush1.bf16.msra.mxu0 %v340
    %365 = vmatprep.subr.bf16.mxu0 0
    %366 = vmatpush1.bf16.msra.mxu0 0
    %367 = vmatprep.subr.bf16.mxu0 0
    %368 = vmatpush1.bf16.msra.mxu0 0
    %369 = vmatprep.subr.bf16.mxu0 0
    %370 = vmatpush1.bf16.msra.mxu0 0
    %371 = vmatprep.subr.bf16.mxu0 0
    %372 = vmatpush1.bf16.msra.mxu0 0
    %373 = vmatprep.subr.bf16.mxu0 0
    %374 = vmatpush1.bf16.msra.mxu0 0
    %375 = vmatprep.subr.bf16.mxu0 0
    %376 = vmatpush1.bf16.msra.mxu0 0
    %377 = vmatprep.subr.bf16.mxu0 0
    %378 = vmatpush1.bf16.msra.mxu0 0
    %379 = vmatprep.subr.bf16.mxu0 0
    %380 = vmatpush1.bf16.msra.mxu0 0
    %381 = vmatprep.mubr.bf16.mxu0 0
    %382 = vmatmul.mubr.bf16.gmra.mrb[0].mxu0 %v283
    %v383 = vpop.f32.mrb[0].mxu0
    %v384 = vadd.f32 0.0, %v383
    %v385 = vpop.f32.mrb[0].mxu0
    %v386 = vpop.f32.mrb[0].mxu0
    %v387 = vadd.f32 0.0, %v386
    %v388 = vpop.f32.mrb[0].mxu0
    %389 = vmatprep.mubr.bf16.mxu0 0
    %390 = vmatmul.mubr.bf16.gmra.mrb[0].mxu0 %v284
    %v391 = vpop.f32.mrb[0].mxu0
    %v392 = vadd.f32 0.0, %v391
    %v393 = vpop.f32.mrb[0].mxu0
    %v394 = vpop.f32.mrb[0].mxu0
    %v395 = vadd.f32 0.0, %v394
    %v396 = vpop.f32.mrb[0].mxu0
    %397 = vdwg.mxu0
    %v398 = vadd.f32 %v275, %v384
    %v399 = vadd.f32 %v279, %v387
    %v400 = vadd.f32 %v275, %v392
    %v401 = vadd.f32 %v279, %v395
    %v402 = vmax.f32 %v398, %v399
    %v403 = vrot.slane %v402, 4
    %v404 = vmax.f32 %v402, %v403
    %v405 = vrot.slane %v404, 2
    %v406 = vmax.f32 %v404, %v405
    %v407 = vrot.slane %v406, 1
    %v408 = vmax.f32 %v406, %v407
    %v409 = vsub.f32 %v398, %v408
    %v410 = vsub.f32 %v399, %v408
    %v411 = vmul.f32 %v409, 1.442695
    %v412 = vpow.pop %v411
    %v413 = vmul.f32 %v410, 1.442695
    %v414 = vpow.pop %v413
    %v415 = vmax.f32 %v400, %v401
    %v416 = vrot.slane %v415, 4
    %v417 = vmax.f32 %v415, %v416
    %v418 = vrot.slane %v417, 2
    %v419 = vmax.f32 %v417, %v418
    %v420 = vrot.slane %v419, 1
    %v421 = vmax.f32 %v419, %v420
    %v422 = vsub.f32 %v400, %v421
    %v423 = vsub.f32 %v401, %v421
    %v424 = vmul.f32 %v422, 1.442695
    %v425 = vpow.pop %v424
    %v426 = vmul.f32 %v423, 1.442695
    %v427 = vpow.pop %v426
    %v428 = vadd.f32 %v412, %v425
    %v429 = vadd.f32 %v414, %v427
    %v430 = vrcp.pop %v428
    %v431 = vmul.f32 1.0, %v430
    %v432 = vrcp.pop %v429
    %v433 = vmul.f32 1.0, %v432
    %v434 = vmul.f32 %v412, %v431
    %v435 = vmul.f32 %v414, %v433
    %v436 = vmul.f32 %v425, %v431
    %v437 = vmul.f32 %v427, %v433
    %v438 = vmul.f32 %v436, %v138
    %v439 = vmul.f32 %v437, %v141
    %v440 = vmul.f32 %v434, %v130
    %v441 = vmul.f32 %v435, %v133
    %v442 = vadd.f32 %v438, %v440
    %v443 = vadd.f32 %v439, %v441
    %v444 = vpack.c.bf16 %v443, %v442
    %v445 = vld [vmem:[%s8] sm:$0xf]
    %v446 = vld [vmem:[%s8 + $0x4] sm:$0xf]
    %v447 = vld [vmem:[%s8 + $0x8] sm:$0xf]
    %v448 = vld [vmem:[%s8 + $0xc] sm:$0xf]
    %v449 = vld [vmem:[%s8 + $0x10] sm:$0xf]
    %v450 = vld [vmem:[%s8 + $0x14] sm:$0xf]
    %v451 = vld [vmem:[%s8 + $0x18] sm:$0xf]
    %v452 = vld [vmem:[%s8 + $0x1c] sm:$0xf]
    %v453 = vld [vmem:[%s8 + $0x20] sm:$0xf]
    %v454 = vld [vmem:[%s8 + $0x24] sm:$0xf]
    %v455 = vld [vmem:[%s8 + $0x28] sm:$0xf]
    %v456 = vld [vmem:[%s8 + $0x2c] sm:$0xf]
    %v457 = vld [vmem:[%s8 + $0x30] sm:$0xf]
    %v458 = vld [vmem:[%s8 + $0x34] sm:$0xf]
    %v459 = vld [vmem:[%s8 + $0x38] sm:$0xf]
    %v460 = vld [vmem:[%s8 + $0x3c] sm:$0xf]
    %v477 = vunpack.c.l.b16 %v445
    %v478 = vunpack.c.l.b16 %v446
    %v479 = vunpack.c.l.b16 %v447
    %v480 = vunpack.c.l.b16 %v448
    %v481 = vunpack.c.l.b16 %v449
    %v482 = vunpack.c.l.b16 %v450
    %v483 = vunpack.c.l.b16 %v451
    %v484 = vunpack.c.l.b16 %v452
    %v485 = vunpack.c.l.b16 %v453
    %v486 = vunpack.c.l.b16 %v454
    %v487 = vunpack.c.l.b16 %v455
    %v488 = vunpack.c.l.b16 %v456
    %v489 = vunpack.c.l.b16 %v457
    %v490 = vunpack.c.l.b16 %v458
    %v491 = vunpack.c.l.b16 %v459
    %v492 = vunpack.c.l.b16 %v460
    %v493 = vpack.c.b16 %v478, %v477
    %v494 = vpack.c.b16 %v480, %v479
    %v495 = vpack.c.b16 %v482, %v481
    %v496 = vpack.c.b16 %v484, %v483
    %v497 = vpack.c.b16 %v486, %v485
    %v498 = vpack.c.b16 %v488, %v487
    %v499 = vpack.c.b16 %v490, %v489
    %v500 = vpack.c.b16 %v492, %v491
    %509 = vmatprep.subr.bf16.mxu0 0
    %510 = vmatpush1.bf16.msra.mxu0 %v493
    %511 = vmatprep.subr.bf16.mxu0 0
    %512 = vmatpush1.bf16.msra.mxu0 %v494
    %513 = vmatprep.subr.bf16.mxu0 0
    %514 = vmatpush1.bf16.msra.mxu0 %v495
    %515 = vmatprep.subr.bf16.mxu0 0
    %516 = vmatpush1.bf16.msra.mxu0 %v496
    %517 = vmatprep.subr.bf16.mxu0 0
    %518 = vmatpush1.bf16.msra.mxu0 %v497
    %519 = vmatprep.subr.bf16.mxu0 0
    %520 = vmatpush1.bf16.msra.mxu0 %v498
    %521 = vmatprep.subr.bf16.mxu0 0
    %522 = vmatpush1.bf16.msra.mxu0 %v499
    %523 = vmatprep.subr.bf16.mxu0 0
    %524 = vmatpush1.bf16.msra.mxu0 %v500
    %525 = vmatprep.subr.bf16.mxu0 0
    %526 = vmatpush1.bf16.msra.mxu0 0
    %527 = vmatprep.subr.bf16.mxu0 0
    %528 = vmatpush1.bf16.msra.mxu0 0
    %529 = vmatprep.subr.bf16.mxu0 0
    %530 = vmatpush1.bf16.msra.mxu0 0
    %531 = vmatprep.subr.bf16.mxu0 0
    %532 = vmatpush1.bf16.msra.mxu0 0
    %533 = vmatprep.subr.bf16.mxu0 0
    %534 = vmatpush1.bf16.msra.mxu0 0
    %535 = vmatprep.subr.bf16.mxu0 0
    %536 = vmatpush1.bf16.msra.mxu0 0
    %537 = vmatprep.subr.bf16.mxu0 0
    %538 = vmatpush1.bf16.msra.mxu0 0
    %539 = vmatprep.subr.bf16.mxu0 0
    %540 = vmatpush1.bf16.msra.mxu0 0
    %541 = vmatprep.mubr.bf16.mxu0 0
    %542 = vmatmul.mubr.bf16.gmra.mrb[0].mxu0 %v444
    %v543 = vpop.f32.mrb[0].mxu0
    %v544 = vadd.f32 %v277, %v543
    %v545 = vpop.f32.mrb[0].mxu0
    %v546 = vpop.f32.mrb[0].mxu0
    %v547 = vadd.f32 %v281, %v546
    %v548 = vpop.f32.mrb[0].mxu0
    %549 = vdwg.mxu0
    %vm550 = vcmp.ge.f32.partialorder %v544, 0.0
    %vm551 = vcmp.ge.f32.partialorder %v547, 0.0
    %v552 = vmul.f32 %v544, 0.2
    %v553 = vmul.f32 %v547, 0.2
    %v554 = vsel %vm550, %v544, %v552
    %v555 = vsel %vm551, %v547, %v553
    %556 = vst [vmem:[#allocation2] sm:$0xff] %v554
    %557 = vst [vmem:[#allocation2 + $0x8] sm:$0xff] %v555
    %v558 = vlaneseq
    %v559 = vshrl.u32 %v558, 7
    %v560 = vadd.s32 %v559, 8
    %v561 = vadd.s32 %v559, 16
    %v562 = vadd.s32 %v559, 24
    %v563 = vadd.s32 %v559, 32
    %v564 = vadd.s32 %v559, 40
    %v565 = vadd.s32 %v559, 48
    %v566 = vadd.s32 %v559, 56
    %v567 = vadd.s32 %v559, 64
    %v568 = vadd.s32 %v559, 72
    %v569 = vadd.s32 %v559, 80
    %v570 = vadd.s32 %v559, 88
    %v571 = vadd.s32 %v559, 96
    %v572 = vadd.s32 %v559, 104
    %v573 = vadd.s32 %v559, 112
    %v574 = vadd.s32 %v559, 120
    %v575 = vld [vmem:[%s2] sm:$0x1]
    %v576 = vlaneseq
    %v577 = vshrl.u32 %v576, 7
    %v578 = vsub.s32 0, %v577
    %v579 = vrot.slane %v575, %v578
    %vm580 = vcmp.eq.s32.totalorder %v579, %v559
    %vm581 = vcmp.eq.s32.totalorder %v579, %v560
    %vm582 = vcmp.eq.s32.totalorder %v579, %v561
    %vm583 = vcmp.eq.s32.totalorder %v579, %v562
    %vm584 = vcmp.eq.s32.totalorder %v579, %v563
    %vm585 = vcmp.eq.s32.totalorder %v579, %v564
    %vm586 = vcmp.eq.s32.totalorder %v579, %v565
    %vm587 = vcmp.eq.s32.totalorder %v579, %v566
    %vm588 = vcmp.eq.s32.totalorder %v579, %v567
    %vm589 = vcmp.eq.s32.totalorder %v579, %v568
    %vm590 = vcmp.eq.s32.totalorder %v579, %v569
    %vm591 = vcmp.eq.s32.totalorder %v579, %v570
    %vm592 = vcmp.eq.s32.totalorder %v579, %v571
    %vm593 = vcmp.eq.s32.totalorder %v579, %v572
    %vm594 = vcmp.eq.s32.totalorder %v579, %v573
    %vm595 = vcmp.eq.s32.totalorder %v579, %v574
    %v596 = vsel %vm580, 1, 0
    %v597 = vsel %vm581, 1, 0
    %v598 = vsel %vm582, 1, 0
    %v599 = vsel %vm583, 1, 0
    %v600 = vsel %vm584, 1, 0
    %v601 = vsel %vm585, 1, 0
    %v602 = vsel %vm586, 1, 0
    %v603 = vsel %vm587, 1, 0
    %v604 = vsel %vm588, 1, 0
    %v605 = vsel %vm589, 1, 0
    %v606 = vsel %vm590, 1, 0
    %v607 = vsel %vm591, 1, 0
    %v608 = vsel %vm592, 1, 0
    %v609 = vsel %vm593, 1, 0
    %v610 = vsel %vm594, 1, 0
    %v611 = vsel %vm595, 1, 0
    %v612 = vcvt.s32.f32 %v596
    %v613 = vcvt.s32.f32 %v597
    %v614 = vcvt.s32.f32 %v598
    %v615 = vcvt.s32.f32 %v599
    %v616 = vcvt.s32.f32 %v600
    %v617 = vcvt.s32.f32 %v601
    %v618 = vcvt.s32.f32 %v602
    %v619 = vcvt.s32.f32 %v603
    %v620 = vcvt.s32.f32 %v604
    %v621 = vcvt.s32.f32 %v605
    %v622 = vcvt.s32.f32 %v606
    %v623 = vcvt.s32.f32 %v607
    %v624 = vcvt.s32.f32 %v608
    %v625 = vcvt.s32.f32 %v609
    %v626 = vcvt.s32.f32 %v610
    %v627 = vcvt.s32.f32 %v611
    %vm628 = vcmask 130048
    %v630 = vsel %vm628, %v612, 0
    %v633 = vsel %vm628, %v613, 0
    %v636 = vsel %vm628, %v614, 0
    %v639 = vsel %vm628, %v615, 0
    %v642 = vsel %vm628, %v616, 0
    %v645 = vsel %vm628, %v617, 0
    %v648 = vsel %vm628, %v618, 0
    %v651 = vsel %vm628, %v619, 0
    %v654 = vsel %vm628, %v620, 0
    %v657 = vsel %vm628, %v621, 0
    %v660 = vsel %vm628, %v622, 0
    %v663 = vsel %vm628, %v623, 0
    %v666 = vsel %vm628, %v624, 0
    %v669 = vsel %vm628, %v625, 0
    %v672 = vsel %vm628, %v626, 0
    %v675 = vsel %vm628, %v627, 0
    %677 = vmatprep.subr.mxu0 0.0
    %678 = vmatpush1.msra.mxu0 %v412
    %679 = vmatprep.subr.mxu0 0.0
    %680 = vmatpush1.msra.mxu0 %v414
    %681 = vmatprep.subr.mxu0 0.0
    %682 = vmatpush1.msra.mxu0 0.0
    %683 = vmatprep.subr.mxu0 0.0
    %684 = vmatpush1.msra.mxu0 0.0
    %685 = vmatprep.subr.mxu0 0.0
    %686 = vmatpush1.msra.mxu0 0.0
    %687 = vmatprep.subr.mxu0 0.0
    %688 = vmatpush1.msra.mxu0 0.0
    %689 = vmatprep.subr.mxu0 0.0
    %690 = vmatpush1.msra.mxu0 0.0
    %691 = vmatprep.subr.mxu0 0.0
    %692 = vmatpush1.msra.mxu0 0.0
    %693 = vmatprep.subr.mxu0 0.0
    %694 = vmatpush1.msra.mxu0 0.0
    %695 = vmatprep.subr.mxu0 0.0
    %696 = vmatpush1.msra.mxu0 0.0
    %697 = vmatprep.subr.mxu0 0.0
    %698 = vmatpush1.msra.mxu0 0.0
    %699 = vmatprep.subr.mxu0 0.0
    %700 = vmatpush1.msra.mxu0 0.0
    %701 = vmatprep.subr.mxu0 0.0
    %702 = vmatpush1.msra.mxu0 0.0
    %703 = vmatprep.subr.mxu0 0.0
    %704 = vmatpush1.msra.mxu0 0.0
    %705 = vmatprep.subr.mxu0 0.0
    %706 = vmatpush1.msra.mxu0 0.0
    %707 = vmatprep.subr.mxu0 0.0
    %708 = vmatpush1.msra.mxu0 0.0
    %709 = vmatprep.subr.mxu0 0.0
    %710 = vmatpush1.msra.mxu0 0.0
    %711 = vmatprep.subr.mxu0 0.0
    %712 = vmatpush1.msra.mxu0 0.0
    %713 = vmatprep.subr.mxu0 0.0
    %714 = vmatpush1.msra.mxu0 0.0
    %715 = vmatprep.subr.mxu0 0.0
    %716 = vmatpush1.msra.mxu0 0.0
    %717 = vmatprep.subr.mxu0 0.0
    %718 = vmatpush1.msra.mxu0 0.0
    %719 = vmatprep.subr.mxu0 0.0
    %720 = vmatpush1.msra.mxu0 0.0
    %721 = vmatprep.subr.mxu0 0.0
    %722 = vmatpush1.msra.mxu0 0.0
    %723 = vmatprep.subr.mxu0 0.0
    %724 = vmatpush1.msra.mxu0 0.0
    %725 = vmatprep.subr.mxu0 0.0
    %726 = vmatpush1.msra.mxu0 0.0
    %727 = vmatprep.subr.mxu0 0.0
    %728 = vmatpush1.msra.mxu0 0.0
    %729 = vmatprep.subr.mxu0 0.0
    %730 = vmatpush1.msra.mxu0 0.0
    %731 = vmatprep.subr.mxu0 0.0
    %732 = vmatpush1.msra.mxu0 0.0
    %733 = vmatprep.subr.mxu0 0.0
    %734 = vmatpush1.msra.mxu0 0.0
    %735 = vmatprep.subr.mxu0 0.0
    %736 = vmatpush1.msra.mxu0 0.0
    %737 = vmatprep.subr.mxu0 0.0
    %738 = vmatpush1.msra.mxu0 0.0
    %739 = vmatprep.subr.mxu0 0.0
    %740 = vmatpush1.msra.mxu0 0.0
    %741 = vmatprep.mubr.f32.mxu0 0.0
    %742 = vmatmul.mubr.f32.gmra.mrb[0].mxu0 %v630
    %v743 = vpop.f32.mrb[0].mxu0
    %v744 = vadd.f32 1e-05, %v743
    %v745 = vpop.f32.mrb[0].mxu0
    %746 = vmatprep.mubr.f32.mxu0 0.0
    %747 = vmatmul.mubr.f32.gmra.mrb[0].mxu0 %v633
    %v748 = vpop.f32.mrb[0].mxu0
    %v749 = vadd.f32 1e-05, %v748
    %v750 = vpop.f32.mrb[0].mxu0
    %751 = vmatprep.mubr.f32.mxu0 0.0
    %752 = vmatmul.mubr.f32.gmra.mrb[0].mxu0 %v636
    %v753 = vpop.f32.mrb[0].mxu0
    %v754 = vadd.f32 1e-05, %v753
    %v755 = vpop.f32.mrb[0].mxu0
    %756 = vmatprep.mubr.f32.mxu0 0.0
    %757 = vmatmul.mubr.f32.gmra.mrb[0].mxu0 %v639
    %v758 = vpop.f32.mrb[0].mxu0
    %v759 = vadd.f32 1e-05, %v758
    %v760 = vpop.f32.mrb[0].mxu0
    %761 = vmatprep.mubr.f32.mxu0 0.0
    %762 = vmatmul.mubr.f32.gmra.mrb[0].mxu0 %v642
    %v763 = vpop.f32.mrb[0].mxu0
    %v764 = vadd.f32 1e-05, %v763
    %v765 = vpop.f32.mrb[0].mxu0
    %766 = vmatprep.mubr.f32.mxu0 0.0
    %767 = vmatmul.mubr.f32.gmra.mrb[0].mxu0 %v645
    %v768 = vpop.f32.mrb[0].mxu0
    %v769 = vadd.f32 1e-05, %v768
    %v770 = vpop.f32.mrb[0].mxu0
    %771 = vmatprep.mubr.f32.mxu0 0.0
    %772 = vmatmul.mubr.f32.gmra.mrb[0].mxu0 %v648
    %v773 = vpop.f32.mrb[0].mxu0
    %v774 = vadd.f32 1e-05, %v773
    %v775 = vpop.f32.mrb[0].mxu0
    %776 = vmatprep.mubr.f32.mxu0 0.0
    %777 = vmatmul.mubr.f32.gmra.mrb[0].mxu0 %v651
    %v778 = vpop.f32.mrb[0].mxu0
    %v779 = vadd.f32 1e-05, %v778
    %v780 = vpop.f32.mrb[0].mxu0
    %781 = vmatprep.mubr.f32.mxu0 0.0
    %782 = vmatmul.mubr.f32.gmra.mrb[0].mxu0 %v654
    %v783 = vpop.f32.mrb[0].mxu0
    %v784 = vadd.f32 1e-05, %v783
    %v785 = vpop.f32.mrb[0].mxu0
    %786 = vmatprep.mubr.f32.mxu0 0.0
    %787 = vmatmul.mubr.f32.gmra.mrb[0].mxu0 %v657
    %v788 = vpop.f32.mrb[0].mxu0
    %v789 = vadd.f32 1e-05, %v788
    %v790 = vpop.f32.mrb[0].mxu0
    %791 = vmatprep.mubr.f32.mxu0 0.0
    %792 = vmatmul.mubr.f32.gmra.mrb[0].mxu0 %v660
    %v793 = vpop.f32.mrb[0].mxu0
    %v794 = vadd.f32 1e-05, %v793
    %v795 = vpop.f32.mrb[0].mxu0
    %796 = vmatprep.mubr.f32.mxu0 0.0
    %797 = vmatmul.mubr.f32.gmra.mrb[0].mxu0 %v663
    %v798 = vpop.f32.mrb[0].mxu0
    %v799 = vadd.f32 1e-05, %v798
    %v800 = vpop.f32.mrb[0].mxu0
    %801 = vmatprep.mubr.f32.mxu0 0.0
    %802 = vmatmul.mubr.f32.gmra.mrb[0].mxu0 %v666
    %v803 = vpop.f32.mrb[0].mxu0
    %v804 = vadd.f32 1e-05, %v803
    %v805 = vpop.f32.mrb[0].mxu0
    %806 = vmatprep.mubr.f32.mxu0 0.0
    %807 = vmatmul.mubr.f32.gmra.mrb[0].mxu0 %v669
    %v808 = vpop.f32.mrb[0].mxu0
    %v809 = vadd.f32 1e-05, %v808
    %v810 = vpop.f32.mrb[0].mxu0
    %811 = vmatprep.mubr.f32.mxu0 0.0
    %812 = vmatmul.mubr.f32.gmra.mrb[0].mxu0 %v672
    %v813 = vpop.f32.mrb[0].mxu0
    %v814 = vadd.f32 1e-05, %v813
    %v815 = vpop.f32.mrb[0].mxu0
    %816 = vmatprep.mubr.f32.mxu0 0.0
    %817 = vmatmul.mubr.f32.gmra.mrb[0].mxu0 %v675
    %v818 = vpop.f32.mrb[0].mxu0
    %v819 = vadd.f32 1e-05, %v818
    %v820 = vpop.f32.mrb[0].mxu0
    %821 = vdwg.mxu0
    %v822 = vrcp.pop %v744
    %v823 = vrcp.pop %v749
    %v824 = vrcp.pop %v754
    %v825 = vrcp.pop %v759
    %v826 = vrcp.pop %v764
    %v827 = vrcp.pop %v769
    %v828 = vrcp.pop %v774
    %v829 = vrcp.pop %v779
    %v830 = vrcp.pop %v784
    %v831 = vrcp.pop %v789
    %v832 = vrcp.pop %v794
    %v833 = vrcp.pop %v799
    %v834 = vrcp.pop %v804
    %v835 = vrcp.pop %v809
    %v836 = vrcp.pop %v814
    %v837 = vrcp.pop %v819
    %838 = vmatprep.subr.mxu0 0.0
    %839 = vmatpush1.msra.mxu0 %v822
    %840 = vmatprep.subr.mxu0 0.0
    %841 = vmatpush1.msra.mxu0 %v823
    %842 = vmatprep.subr.mxu0 0.0
    %843 = vmatpush1.msra.mxu0 %v824
    %844 = vmatprep.subr.mxu0 0.0
    %845 = vmatpush1.msra.mxu0 %v825
    %846 = vmatprep.subr.mxu0 0.0
    %847 = vmatpush1.msra.mxu0 %v826
    %848 = vmatprep.subr.mxu0 0.0
    %849 = vmatpush1.msra.mxu0 %v827
    %850 = vmatprep.subr.mxu0 0.0
    %851 = vmatpush1.msra.mxu0 %v828
    %852 = vmatprep.subr.mxu0 0.0
    %853 = vmatpush1.msra.mxu0 %v829
    %854 = vmatprep.subr.mxu0 0.0
    %855 = vmatpush1.msra.mxu0 %v830
    %856 = vmatprep.subr.mxu0 0.0
    %857 = vmatpush1.msra.mxu0 %v831
    %858 = vmatprep.subr.mxu0 0.0
    %859 = vmatpush1.msra.mxu0 %v832
    %860 = vmatprep.subr.mxu0 0.0
    %861 = vmatpush1.msra.mxu0 %v833
    %862 = vmatprep.subr.mxu0 0.0
    %863 = vmatpush1.msra.mxu0 %v834
    %864 = vmatprep.subr.mxu0 0.0
    %865 = vmatpush1.msra.mxu0 %v835
    %866 = vmatprep.subr.mxu0 0.0
    %867 = vmatpush1.msra.mxu0 %v836
    %868 = vmatprep.subr.mxu0 0.0
    %869 = vmatpush1.msra.mxu0 %v837
    %870 = vmatprep.subr.mxu0 0.0
    %871 = vmatpush1.msra.mxu0 0.0
    %872 = vmatprep.subr.mxu0 0.0
    %873 = vmatpush1.msra.mxu0 0.0
    %874 = vmatprep.subr.mxu0 0.0
    %875 = vmatpush1.msra.mxu0 0.0
    %876 = vmatprep.subr.mxu0 0.0
    %877 = vmatpush1.msra.mxu0 0.0
    %878 = vmatprep.subr.mxu0 0.0
    %879 = vmatpush1.msra.mxu0 0.0
    %880 = vmatprep.subr.mxu0 0.0
    %881 = vmatpush1.msra.mxu0 0.0
    %882 = vmatprep.subr.mxu0 0.0
    %883 = vmatpush1.msra.mxu0 0.0
    %884 = vmatprep.subr.mxu0 0.0
    %885 = vmatpush1.msra.mxu0 0.0
    %886 = vmatprep.subr.mxu0 0.0
    %887 = vmatpush1.msra.mxu0 0.0
    %888 = vmatprep.subr.mxu0 0.0
    %889 = vmatpush1.msra.mxu0 0.0
    %890 = vmatprep.subr.mxu0 0.0
    %891 = vmatpush1.msra.mxu0 0.0
    %892 = vmatprep.subr.mxu0 0.0
    %893 = vmatpush1.msra.mxu0 0.0
    %894 = vmatprep.subr.mxu0 0.0
    %895 = vmatpush1.msra.mxu0 0.0
    %896 = vmatprep.subr.mxu0 0.0
    %897 = vmatpush1.msra.mxu0 0.0
    %898 = vmatprep.subr.mxu0 0.0
    %899 = vmatpush1.msra.mxu0 0.0
    %900 = vmatprep.subr.mxu0 0.0
    %901 = vmatpush1.msra.mxu0 0.0
    %902 = vmatprep.mubr.f32.mxu0 0.0
    %903 = vmatmul.mubr.f32.gmra.mrb[0].mxu0 %v77
    %v904 = vpop.f32.mrb[0].mxu0
    %v905 = vadd.f32 0.0, %v904
    %v906 = vpop.f32.mrb[0].mxu0
    %907 = vmatprep.mubr.f32.mxu0 0.0
    %908 = vmatmul.mubr.f32.gmra.mrb[0].mxu0 %v78
    %v909 = vpop.f32.mrb[0].mxu0
    %v910 = vadd.f32 0.0, %v909
    %v911 = vpop.f32.mrb[0].mxu0
    %912 = vdwg.mxu0
    %v913 = vmul.f32 %v412, %v905
    %v914 = vmul.f32 %v414, %v910
    %v915 = vmul.f32 %v913, %v52
    %v916 = vmul.f32 %v914, %v53
    %917 = vmatprep.subr.mxu0 0.0
    %918 = vmatpush1.msra.mxu0 %v915
    %919 = vmatprep.subr.mxu0 0.0
    %920 = vmatpush1.msra.mxu0 %v916
    %921 = vmatprep.subr.mxu0 0.0
    %922 = vmatpush1.msra.mxu0 0.0
    %923 = vmatprep.subr.mxu0 0.0
    %924 = vmatpush1.msra.mxu0 0.0
    %925 = vmatprep.subr.mxu0 0.0
    %926 = vmatpush1.msra.mxu0 0.0
    %927 = vmatprep.subr.mxu0 0.0
    %928 = vmatpush1.msra.mxu0 0.0
    %929 = vmatprep.subr.mxu0 0.0
    %930 = vmatpush1.msra.mxu0 0.0
    %931 = vmatprep.subr.mxu0 0.0
    %932 = vmatpush1.msra.mxu0 0.0
    %933 = vmatprep.subr.mxu0 0.0
    %934 = vmatpush1.msra.mxu0 0.0
    %935 = vmatprep.subr.mxu0 0.0
    %936 = vmatpush1.msra.mxu0 0.0
    %937 = vmatprep.subr.mxu0 0.0
    %938 = vmatpush1.msra.mxu0 0.0
    %939 = vmatprep.subr.mxu0 0.0
    %940 = vmatpush1.msra.mxu0 0.0
    %941 = vmatprep.subr.mxu0 0.0
    %942 = vmatpush1.msra.mxu0 0.0
    %943 = vmatprep.subr.mxu0 0.0
    %944 = vmatpush1.msra.mxu0 0.0
    %945 = vmatprep.subr.mxu0 0.0
    %946 = vmatpush1.msra.mxu0 0.0
    %947 = vmatprep.subr.mxu0 0.0
    %948 = vmatpush1.msra.mxu0 0.0
    %949 = vmatprep.subr.mxu0 0.0
    %950 = vmatpush1.msra.mxu0 0.0
    %951 = vmatprep.subr.mxu0 0.0
    %952 = vmatpush1.msra.mxu0 0.0
    %953 = vmatprep.subr.mxu0 0.0
    %954 = vmatpush1.msra.mxu0 0.0
    %955 = vmatprep.subr.mxu0 0.0
    %956 = vmatpush1.msra.mxu0 0.0
    %957 = vmatprep.subr.mxu0 0.0
    %958 = vmatpush1.msra.mxu0 0.0
    %959 = vmatprep.subr.mxu0 0.0
    %960 = vmatpush1.msra.mxu0 0.0
    %961 = vmatprep.subr.mxu0 0.0
    %962 = vmatpush1.msra.mxu0 0.0
    %963 = vmatprep.subr.mxu0 0.0
    %964 = vmatpush1.msra.mxu0 0.0
    %965 = vmatprep.subr.mxu0 0.0
    %966 = vmatpush1.msra.mxu0 0.0
    %967 = vmatprep.subr.mxu0 0.0
    %968 = vmatpush1.msra.mxu0 0.0
    %969 = vmatprep.subr.mxu0 0.0
    %970 = vmatpush1.msra.mxu0 0.0
    %971 = vmatprep.subr.mxu0 0.0
    %972 = vmatpush1.msra.mxu0 0.0
    %973 = vmatprep.subr.mxu0 0.0
    %974 = vmatpush1.msra.mxu0 0.0
    %975 = vmatprep.subr.mxu0 0.0
    %976 = vmatpush1.msra.mxu0 0.0
    %977 = vmatprep.subr.mxu0 0.0
    %978 = vmatpush1.msra.mxu0 0.0
    %979 = vmatprep.subr.mxu0 0.0
    %980 = vmatpush1.msra.mxu0 0.0
    %981 = vmatprep.mubr.f32.mxu0 0.0
    %982 = vmatmul.mubr.f32.gmra.mrb[0].mxu0 %v630
    %v983 = vpop.f32.mrb[0].mxu0
    %v984 = vadd.f32 0.0, %v983
    %v985 = vpop.f32.mrb[0].mxu0
    %986 = vmatprep.mubr.f32.mxu0 0.0
    %987 = vmatmul.mubr.f32.gmra.mrb[0].mxu0 %v633
    %v988 = vpop.f32.mrb[0].mxu0
    %v989 = vadd.f32 0.0, %v988
    %v990 = vpop.f32.mrb[0].mxu0
    %991 = vmatprep.mubr.f32.mxu0 0.0
    %992 = vmatmul.mubr.f32.gmra.mrb[0].mxu0 %v636
    %v993 = vpop.f32.mrb[0].mxu0
    %v994 = vadd.f32 0.0, %v993
    %v995 = vpop.f32.mrb[0].mxu0
    %996 = vmatprep.mubr.f32.mxu0 0.0
    %997 = vmatmul.mubr.f32.gmra.mrb[0].mxu0 %v639
    %v998 = vpop.f32.mrb[0].mxu0
    %v999 = vadd.f32 0.0, %v998
    %v1000 = vpop.f32.mrb[0].mxu0
    %1001 = vmatprep.mubr.f32.mxu0 0.0
    %1002 = vmatmul.mubr.f32.gmra.mrb[0].mxu0 %v642
    %v1003 = vpop.f32.mrb[0].mxu0
    %v1004 = vadd.f32 0.0, %v1003
    %v1005 = vpop.f32.mrb[0].mxu0
    %1006 = vmatprep.mubr.f32.mxu0 0.0
    %1007 = vmatmul.mubr.f32.gmra.mrb[0].mxu0 %v645
    %v1008 = vpop.f32.mrb[0].mxu0
    %v1009 = vadd.f32 0.0, %v1008
    %v1010 = vpop.f32.mrb[0].mxu0
    %1011 = vmatprep.mubr.f32.mxu0 0.0
    %1012 = vmatmul.mubr.f32.gmra.mrb[0].mxu0 %v648
    %v1013 = vpop.f32.mrb[0].mxu0
    %v1014 = vadd.f32 0.0, %v1013
    %v1015 = vpop.f32.mrb[0].mxu0
    %1016 = vmatprep.mubr.f32.mxu0 0.0
    %1017 = vmatmul.mubr.f32.gmra.mrb[0].mxu0 %v651
    %v1018 = vpop.f32.mrb[0].mxu0
    %v1019 = vadd.f32 0.0, %v1018
    %v1020 = vpop.f32.mrb[0].mxu0
    %1021 = vmatprep.mubr.f32.mxu0 0.0
    %1022 = vmatmul.mubr.f32.gmra.mrb[0].mxu0 %v654
    %v1023 = vpop.f32.mrb[0].mxu0
    %v1024 = vadd.f32 0.0, %v1023
    %v1025 = vpop.f32.mrb[0].mxu0
    %1026 = vmatprep.mubr.f32.mxu0 0.0
    %1027 = vmatmul.mubr.f32.gmra.mrb[0].mxu0 %v657
    %v1028 = vpop.f32.mrb[0].mxu0
    %v1029 = vadd.f32 0.0, %v1028
    %v1030 = vpop.f32.mrb[0].mxu0
    %1031 = vmatprep.mubr.f32.mxu0 0.0
    %1032 = vmatmul.mubr.f32.gmra.mrb[0].mxu0 %v660
    %v1033 = vpop.f32.mrb[0].mxu0
    %v1034 = vadd.f32 0.0, %v1033
    %v1035 = vpop.f32.mrb[0].mxu0
    %1036 = vmatprep.mubr.f32.mxu0 0.0
    %1037 = vmatmul.mubr.f32.gmra.mrb[0].mxu0 %v663
    %v1038 = vpop.f32.mrb[0].mxu0
    %v1039 = vadd.f32 0.0, %v1038
    %v1040 = vpop.f32.mrb[0].mxu0
    %1041 = vmatprep.mubr.f32.mxu0 0.0
    %1042 = vmatmul.mubr.f32.gmra.mrb[0].mxu0 %v666
    %v1043 = vpop.f32.mrb[0].mxu0
    %v1044 = vadd.f32 0.0, %v1043
    %v1045 = vpop.f32.mrb[0].mxu0
    %1046 = vmatprep.mubr.f32.mxu0 0.0
    %1047 = vmatmul.mubr.f32.gmra.mrb[0].mxu0 %v669
    %v1048 = vpop.f32.mrb[0].mxu0
    %v1049 = vadd.f32 0.0, %v1048
    %v1050 = vpop.f32.mrb[0].mxu0
    %1051 = vmatprep.mubr.f32.mxu0 0.0
    %1052 = vmatmul.mubr.f32.gmra.mrb[0].mxu0 %v672
    %v1053 = vpop.f32.mrb[0].mxu0
    %v1054 = vadd.f32 0.0, %v1053
    %v1055 = vpop.f32.mrb[0].mxu0
    %1056 = vmatprep.mubr.f32.mxu0 0.0
    %1057 = vmatmul.mubr.f32.gmra.mrb[0].mxu0 %v675
    %v1058 = vpop.f32.mrb[0].mxu0
    %v1059 = vadd.f32 0.0, %v1058
    %v1060 = vpop.f32.mrb[0].mxu0
    %1061 = vdwg.mxu0
    %v1062 = vpack.c.bf16 %v989, %v984
    %v1063 = vpack.c.bf16 %v999, %v994
    %v1064 = vpack.c.bf16 %v1009, %v1004
    %v1065 = vpack.c.bf16 %v1019, %v1014
    %v1066 = vpack.c.bf16 %v1029, %v1024
    %v1067 = vpack.c.bf16 %v1039, %v1034
    %v1068 = vpack.c.bf16 %v1049, %v1044
    %v1069 = vpack.c.bf16 %v1059, %v1054
    %v1070 = vld [vmem:[%s7] sm:$0xf]
    %v1071 = vld [vmem:[%s7 + $0x4] sm:$0xf]
    %v1072 = vld [vmem:[%s7 + $0x8] sm:$0xf]
    %v1073 = vld [vmem:[%s7 + $0xc] sm:$0xf]
    %v1074 = vld [vmem:[%s7 + $0x10] sm:$0xf]
    %v1075 = vld [vmem:[%s7 + $0x14] sm:$0xf]
    %v1076 = vld [vmem:[%s7 + $0x18] sm:$0xf]
    %v1077 = vld [vmem:[%s7 + $0x1c] sm:$0xf]
    %v1078 = vld [vmem:[%s7 + $0x20] sm:$0xf]
    %v1079 = vld [vmem:[%s7 + $0x24] sm:$0xf]
    %v1080 = vld [vmem:[%s7 + $0x28] sm:$0xf]
    %v1081 = vld [vmem:[%s7 + $0x2c] sm:$0xf]
    %v1082 = vld [vmem:[%s7 + $0x30] sm:$0xf]
    %v1083 = vld [vmem:[%s7 + $0x34] sm:$0xf]
    %v1084 = vld [vmem:[%s7 + $0x38] sm:$0xf]
    %v1085 = vld [vmem:[%s7 + $0x3c] sm:$0xf]
    %v1086 = vld [vmem:[%s7 + $0x40] sm:$0xf]
    %v1087 = vld [vmem:[%s7 + $0x44] sm:$0xf]
    %v1088 = vld [vmem:[%s7 + $0x48] sm:$0xf]
    %v1089 = vld [vmem:[%s7 + $0x4c] sm:$0xf]
    %v1090 = vld [vmem:[%s7 + $0x50] sm:$0xf]
    %v1091 = vld [vmem:[%s7 + $0x54] sm:$0xf]
    %v1092 = vld [vmem:[%s7 + $0x58] sm:$0xf]
    %v1093 = vld [vmem:[%s7 + $0x5c] sm:$0xf]
    %v1094 = vld [vmem:[%s7 + $0x60] sm:$0xf]
    %v1095 = vld [vmem:[%s7 + $0x64] sm:$0xf]
    %v1096 = vld [vmem:[%s7 + $0x68] sm:$0xf]
    %v1097 = vld [vmem:[%s7 + $0x6c] sm:$0xf]
    %v1098 = vld [vmem:[%s7 + $0x70] sm:$0xf]
    %v1099 = vld [vmem:[%s7 + $0x74] sm:$0xf]
    %v1100 = vld [vmem:[%s7 + $0x78] sm:$0xf]
    %v1101 = vld [vmem:[%s7 + $0x7c] sm:$0xf]
    %v1134 = vunpack.c.l.b16 %v1070
    %v1135 = vunpack.c.l.b16 %v1071
    %v1136 = vunpack.c.l.b16 %v1072
    %v1137 = vunpack.c.l.b16 %v1073
    %v1138 = vunpack.c.l.b16 %v1074
    %v1139 = vunpack.c.l.b16 %v1075
    %v1140 = vunpack.c.l.b16 %v1076
    %v1141 = vunpack.c.l.b16 %v1077
    %v1142 = vunpack.c.l.b16 %v1078
    %v1143 = vunpack.c.l.b16 %v1079
    %v1144 = vunpack.c.l.b16 %v1080
    %v1145 = vunpack.c.l.b16 %v1081
    %v1146 = vunpack.c.l.b16 %v1082
    %v1147 = vunpack.c.l.b16 %v1083
    %v1148 = vunpack.c.l.b16 %v1084
    %v1149 = vunpack.c.l.b16 %v1085
    %v1150 = vunpack.c.l.b16 %v1086
    %v1151 = vunpack.c.l.b16 %v1087
    %v1152 = vunpack.c.l.b16 %v1088
    %v1153 = vunpack.c.l.b16 %v1089
    %v1154 = vunpack.c.l.b16 %v1090
    %v1155 = vunpack.c.l.b16 %v1091
    %v1156 = vunpack.c.l.b16 %v1092
    %v1157 = vunpack.c.l.b16 %v1093
    %v1158 = vunpack.c.l.b16 %v1094
    %v1159 = vunpack.c.l.b16 %v1095
    %v1160 = vunpack.c.l.b16 %v1096
    %v1161 = vunpack.c.l.b16 %v1097
    %v1162 = vunpack.c.l.b16 %v1098
    %v1163 = vunpack.c.l.b16 %v1099
    %v1164 = vunpack.c.l.b16 %v1100
    %v1165 = vunpack.c.l.b16 %v1101
    %v1166 = vpack.c.b16 %v1135, %v1134
    %v1167 = vpack.c.b16 %v1137, %v1136
    %v1168 = vpack.c.b16 %v1139, %v1138
    %v1169 = vpack.c.b16 %v1141, %v1140
    %v1170 = vpack.c.b16 %v1143, %v1142
    %v1171 = vpack.c.b16 %v1145, %v1144
    %v1172 = vpack.c.b16 %v1147, %v1146
    %v1173 = vpack.c.b16 %v1149, %v1148
    %v1174 = vpack.c.b16 %v1151, %v1150
    %v1175 = vpack.c.b16 %v1153, %v1152
    %v1176 = vpack.c.b16 %v1155, %v1154
    %v1177 = vpack.c.b16 %v1157, %v1156
    %v1178 = vpack.c.b16 %v1159, %v1158
    %v1179 = vpack.c.b16 %v1161, %v1160
    %v1180 = vpack.c.b16 %v1163, %v1162
    %v1181 = vpack.c.b16 %v1165, %v1164
    %1198 = vmatprep.subr.bf16.mxu0 0
    %1199 = vmatpush1.bf16.msra.mxu0 %v1166
    %1200 = vmatprep.subr.bf16.mxu0 0
    %1201 = vmatpush1.bf16.msra.mxu0 %v1167
    %1202 = vmatprep.subr.bf16.mxu0 0
    %1203 = vmatpush1.bf16.msra.mxu0 %v1168
    %1204 = vmatprep.subr.bf16.mxu0 0
    %1205 = vmatpush1.bf16.msra.mxu0 %v1169
    %1206 = vmatprep.subr.bf16.mxu0 0
    %1207 = vmatpush1.bf16.msra.mxu0 %v1170
    %1208 = vmatprep.subr.bf16.mxu0 0
    %1209 = vmatpush1.bf16.msra.mxu0 %v1171
    %1210 = vmatprep.subr.bf16.mxu0 0
    %1211 = vmatpush1.bf16.msra.mxu0 %v1172
    %1212 = vmatprep.subr.bf16.mxu0 0
    %1213 = vmatpush1.bf16.msra.mxu0 %v1173
    %1214 = vmatprep.subr.bf16.mxu0 0
    %1215 = vmatpush1.bf16.msra.mxu0 %v1174
    %1216 = vmatprep.subr.bf16.mxu0 0
    %1217 = vmatpush1.bf16.msra.mxu0 %v1175
    %1218 = vmatprep.subr.bf16.mxu0 0
    %1219 = vmatpush1.bf16.msra.mxu0 %v1176
    %1220 = vmatprep.subr.bf16.mxu0 0
    %1221 = vmatpush1.bf16.msra.mxu0 %v1177
    %1222 = vmatprep.subr.bf16.mxu0 0
    %1223 = vmatpush1.bf16.msra.mxu0 %v1178
    %1224 = vmatprep.subr.bf16.mxu0 0
    %1225 = vmatpush1.bf16.msra.mxu0 %v1179
    %1226 = vmatprep.subr.bf16.mxu0 0
    %1227 = vmatpush1.bf16.msra.mxu0 %v1180
    %1228 = vmatprep.subr.bf16.mxu0 0
    %1229 = vmatpush1.bf16.msra.mxu0 %v1181
    %1230 = vmatprep.mubr.bf16.mxu0 %v54
    %1231 = vmatmul.mubr.bf16.gmra.mrb[0].mxu0 %v1062
    %v1232 = vpop.f32.mrb[0].mxu0
    %v1233 = vadd.f32 0.0, %v1232
    %v1234 = vpop.f32.mrb[0].mxu0
    %v1235 = vpop.f32.mrb[0].mxu0
    %v1236 = vadd.f32 0.0, %v1235
    %v1237 = vpop.f32.mrb[0].mxu0
    %1238 = vmatprep.mubr.bf16.mxu0 %v55
    %1239 = vmatmul.mubr.bf16.gmra.mrb[0].mxu0 %v1063
    %v1240 = vpop.f32.mrb[0].mxu0
    %v1241 = vadd.f32 0.0, %v1240
    %v1242 = vpop.f32.mrb[0].mxu0
    %v1243 = vpop.f32.mrb[0].mxu0
    %v1244 = vadd.f32 0.0, %v1243
    %v1245 = vpop.f32.mrb[0].mxu0
    %1246 = vmatprep.mubr.bf16.mxu0 %v56
    %1247 = vmatmul.mubr.bf16.gmra.mrb[0].mxu0 %v1064
    %v1248 = vpop.f32.mrb[0].mxu0
    %v1249 = vadd.f32 0.0, %v1248
    %v1250 = vpop.f32.mrb[0].mxu0
    %v1251 = vpop.f32.mrb[0].mxu0
    %v1252 = vadd.f32 0.0, %v1251
    %v1253 = vpop.f32.mrb[0].mxu0
    %1254 = vmatprep.mubr.bf16.mxu0 %v57
    %1255 = vmatmul.mubr.bf16.gmra.mrb[0].mxu0 %v1065
    %v1256 = vpop.f32.mrb[0].mxu0
    %v1257 = vadd.f32 0.0, %v1256
    %v1258 = vpop.f32.mrb[0].mxu0
    %v1259 = vpop.f32.mrb[0].mxu0
    %v1260 = vadd.f32 0.0, %v1259
    %v1261 = vpop.f32.mrb[0].mxu0
    %1262 = vmatprep.mubr.bf16.mxu0 %v58
    %1263 = vmatmul.mubr.bf16.gmra.mrb[0].mxu0 %v1066
    %v1264 = vpop.f32.mrb[0].mxu0
    %v1265 = vadd.f32 0.0, %v1264
    %v1266 = vpop.f32.mrb[0].mxu0
    %v1267 = vpop.f32.mrb[0].mxu0
    %v1268 = vadd.f32 0.0, %v1267
    %v1269 = vpop.f32.mrb[0].mxu0
    %1270 = vmatprep.mubr.bf16.mxu0 %v59
    %1271 = vmatmul.mubr.bf16.gmra.mrb[0].mxu0 %v1067
    %v1272 = vpop.f32.mrb[0].mxu0
    %v1273 = vadd.f32 0.0, %v1272
    %v1274 = vpop.f32.mrb[0].mxu0
    %v1275 = vpop.f32.mrb[0].mxu0
    %v1276 = vadd.f32 0.0, %v1275
    %v1277 = vpop.f32.mrb[0].mxu0
    %1278 = vmatprep.mubr.bf16.mxu0 %v60
    %1279 = vmatmul.mubr.bf16.gmra.mrb[0].mxu0 %v1068
    %v1280 = vpop.f32.mrb[0].mxu0
    %v1281 = vadd.f32 0.0, %v1280
    %v1282 = vpop.f32.mrb[0].mxu0
    %v1283 = vpop.f32.mrb[0].mxu0
    %v1284 = vadd.f32 0.0, %v1283
    %v1285 = vpop.f32.mrb[0].mxu0
    %1286 = vmatprep.mubr.bf16.mxu0 %v61
    %1287 = vmatmul.mubr.bf16.gmra.mrb[0].mxu0 %v1069
    %v1288 = vpop.f32.mrb[0].mxu0
    %v1289 = vadd.f32 0.0, %v1288
    %v1290 = vpop.f32.mrb[0].mxu0
    %v1291 = vpop.f32.mrb[0].mxu0
    %v1292 = vadd.f32 0.0, %v1291
    %v1293 = vpop.f32.mrb[0].mxu0
    %1294 = vdwg.mxu0
    %vm1295 = vcmp.ge.f32.partialorder %v1233, 0.0
    %vm1296 = vcmp.ge.f32.partialorder %v1236, 0.0
    %vm1297 = vcmp.ge.f32.partialorder %v1241, 0.0
    %vm1298 = vcmp.ge.f32.partialorder %v1244, 0.0
    %vm1299 = vcmp.ge.f32.partialorder %v1249, 0.0
    %vm1300 = vcmp.ge.f32.partialorder %v1252, 0.0
    %vm1301 = vcmp.ge.f32.partialorder %v1257, 0.0
    %vm1302 = vcmp.ge.f32.partialorder %v1260, 0.0
    %vm1303 = vcmp.ge.f32.partialorder %v1265, 0.0
    %vm1304 = vcmp.ge.f32.partialorder %v1268, 0.0
    %vm1305 = vcmp.ge.f32.partialorder %v1273, 0.0
    %vm1306 = vcmp.ge.f32.partialorder %v1276, 0.0
    %vm1307 = vcmp.ge.f32.partialorder %v1281, 0.0
    %vm1308 = vcmp.ge.f32.partialorder %v1284, 0.0
    %vm1309 = vcmp.ge.f32.partialorder %v1289, 0.0
    %vm1310 = vcmp.ge.f32.partialorder %v1292, 0.0
    %v1311 = vmul.f32 %v1233, 0.2
    %v1312 = vmul.f32 %v1236, 0.2
    %v1313 = vmul.f32 %v1241, 0.2
    %v1314 = vmul.f32 %v1244, 0.2
    %v1315 = vmul.f32 %v1249, 0.2
    %v1316 = vmul.f32 %v1252, 0.2
    %v1317 = vmul.f32 %v1257, 0.2
    %v1318 = vmul.f32 %v1260, 0.2
    %v1319 = vmul.f32 %v1265, 0.2
    %v1320 = vmul.f32 %v1268, 0.2
    %v1321 = vmul.f32 %v1273, 0.2
    %v1322 = vmul.f32 %v1276, 0.2
    %v1323 = vmul.f32 %v1281, 0.2
    %v1324 = vmul.f32 %v1284, 0.2
    %v1325 = vmul.f32 %v1289, 0.2
    %v1326 = vmul.f32 %v1292, 0.2
    %v1327 = vsel %vm1295, %v1233, %v1311
    %v1328 = vsel %vm1296, %v1236, %v1312
    %v1329 = vsel %vm1297, %v1241, %v1313
    %v1330 = vsel %vm1298, %v1244, %v1314
    %v1331 = vsel %vm1299, %v1249, %v1315
    %v1332 = vsel %vm1300, %v1252, %v1316
    %v1333 = vsel %vm1301, %v1257, %v1317
    %v1334 = vsel %vm1302, %v1260, %v1318
    %v1335 = vsel %vm1303, %v1265, %v1319
    %v1336 = vsel %vm1304, %v1268, %v1320
    %v1337 = vsel %vm1305, %v1273, %v1321
    %v1338 = vsel %vm1306, %v1276, %v1322
    %v1339 = vsel %vm1307, %v1281, %v1323
    %v1340 = vsel %vm1308, %v1284, %v1324
    %v1341 = vsel %vm1309, %v1289, %v1325
    %v1342 = vsel %vm1310, %v1292, %v1326
    %1343 = vst [vmem:[%s9] sm:$0xff] %v1327
    %1344 = vst [vmem:[%s9 + $0x8] sm:$0xff] %v1328
    %1345 = vst [vmem:[%s9 + $0x10] sm:$0xff] %v1329
    %1346 = vst [vmem:[%s9 + $0x18] sm:$0xff] %v1330
    %1347 = vst [vmem:[%s9 + $0x20] sm:$0xff] %v1331
    %1348 = vst [vmem:[%s9 + $0x28] sm:$0xff] %v1332
    %1349 = vst [vmem:[%s9 + $0x30] sm:$0xff] %v1333
    %1350 = vst [vmem:[%s9 + $0x38] sm:$0xff] %v1334
    %1351 = vst [vmem:[%s9 + $0x40] sm:$0xff] %v1335
    %1352 = vst [vmem:[%s9 + $0x48] sm:$0xff] %v1336
    %1353 = vst [vmem:[%s9 + $0x50] sm:$0xff] %v1337
    %1354 = vst [vmem:[%s9 + $0x58] sm:$0xff] %v1338
    %1355 = vst [vmem:[%s9 + $0x60] sm:$0xff] %v1339
    %1356 = vst [vmem:[%s9 + $0x68] sm:$0xff] %v1340
    %1357 = vst [vmem:[%s9 + $0x70] sm:$0xff] %v1341
    %1358 = vst [vmem:[%s9 + $0x78] sm:$0xff] %v1342
    // Predicated region
    $region38: #{graph_attention.1} parent=1 // pred_check
      _
    $region39: #{graph_attention.1} parent=1 // pred_check_branch
      %1360 = sbr.rel (0) target = $region41
    $region40: #{graph_attention.1} parent=1 // pred_region
      _
    $region41: #{graph_attention.1} parent=1 // pred_fallthru
      _
    // Predicated region
    $region42: #{graph_attention.1} parent=1 // pred_check
      _
    $region43: #{graph_attention.1} parent=1 // pred_check_branch
      %1362 = sbr.rel (0) target = $region45
    $region44: #{graph_attention.1} parent=1 // pred_region
      %s1364 = ssub.s32 256, 256
      %1365 = vsyncadd [#allocation3], %s1364
      %s1366 = sshll.u32 [#allocation2], 4
      %s1367 = int_to_ptr.vmem [resolvable:$true] %s1366
      %1372 = dma.vmem_to_hbm [thread:$0]  %s1367, 256, %s10, [#allocation3], 128, 128, 8
    $region45: #{graph_attention.1} parent=1 // pred_fallthru
      _
    // Predicated region
    $region46: #{graph_attention.1} parent=1 // pred_check
      _
    $region47: #{graph_attention.1} parent=1 // pred_check_branch
      %1374 = sbr.rel (0) target = $region49
    $region48: #{graph_attention.1} parent=1 // pred_region
      _
    $region49: #{graph_attention.1} parent=1 // pred_fallthru
      _
    // Predicated region
    $region50: #{graph_attention.1} parent=1 // pred_check
      _
    $region51: #{graph_attention.1} parent=1 // pred_check_branch
      %1376 = sbr.rel (0) target = $region53
    $region52: #{graph_attention.1} parent=1 // pred_region
      %1377 = dma.done [#allocation3], 256
    $region53: #{graph_attention.1} parent=1 // pred_fallthru
      _
    %1378 = vsyncpa [#allocation3], 1

</llo_original>
